<compile_context>
chip_gen: v7x
topology: tpu7x:2x2x1
jax: 0.10.0
libtpu: 0.0.40
codegen_flags: <defaults>
</compile_context>

<pallas_src>
import jax
import jax.numpy as jnp
from jax.experimental import pallas as pl
from jax.experimental.pallas import tpu as pltpu


def _round_up(x, m):
    return (x + m - 1) // m * m


# ------------------------- fused Down kernel (per image) -------------------------
def _down_fused_kernel(x_ref, w1_ref, b1_ref, w2_ref, b2_ref, o_ref,
                       pad1_ref, pad2_ref, col1_ref, col2_ref):
    # x_ref:    (1, 2, 2, Hh, Wh, Cin) bf16   parity-split channels-last input
    # w1_ref:   (9*Cin, Cmid)          bf16   BN1-scale-folded, im2col ordered
    # b1_ref:   (1, Cmid)              f32
    # w2_ref:   (9*Cmid, CoutP)        bf16   BN2-scale-folded, Cout zero-padded to 128 lanes
    # b2_ref:   (1, CoutP)             f32
    # o_ref:    (1, Hh*Wh, CoutP)      f32    lane-dense output slab
    # pad1_ref: (Hh+2, Wh+2, Cin)      f32    zero-padded pooled image (scratch)
    # pad2_ref: (Hh+2, Wh+2, Cmid)     f32    zero-padded conv1 activation (scratch)
    # col1_ref: (Hh*Wh, 9*Cin)         bf16   im2col patches, conv1 (scratch)
    # col2_ref: (Hh*Wh, 9*Cmid)        bf16   im2col patches, conv2 (scratch)
    _, _, _, Hh, Wh, Cin = x_ref.shape
    Cmid = b1_ref.shape[-1]
    HW = Hh * Wh

    # ---------------- MaxPool2d(2): max of the four parity planes (pure VPU) ----------------
    pooled = jnp.maximum(
        jnp.maximum(x_ref[0, 0, 0, :, :, :], x_ref[0, 0, 1, :, :, :]),
        jnp.maximum(x_ref[0, 1, 0, :, :, :], x_ref[0, 1, 1, :, :, :]))      # (Hh, Wh, Cin) bf16

    # ---------------- conv1 (BN scale folded) + bias + ReLU ----------------
    pad1_ref[...] = jnp.zeros_like(pad1_ref)                                 # halo = zeros
    pad1_ref[1:Hh + 1, 1:Wh + 1, :] = pooled.astype(jnp.float32)
    for t in range(9):                                                       # build im2col once
        dy, dx = t // 3, t % 3
        col1_ref[:, t * Cin:(t + 1) * Cin] = (
            pad1_ref[dy:dy + Hh, dx:dx + Wh, :].reshape(HW, Cin).astype(jnp.bfloat16))
    acc1 = jnp.dot(col1_ref[...], w1_ref[...],
                   preferred_element_type=jnp.float32)                       # (HW, Cmid) single MXU pass
    y1 = jnp.maximum(acc1 + b1_ref[...], 0.0)                                # BN bias + ReLU (f32)

    # ---------------- conv2 (BN scale folded) + bias + ReLU ----------------
    pad2_ref[...] = jnp.zeros_like(pad2_ref)
    pad2_ref[1:Hh + 1, 1:Wh + 1, :] = y1.reshape(Hh, Wh, Cmid)
    for t in range(9):
        dy, dx = t // 3, t % 3
        col2_ref[:, t * Cmid:(t + 1) * Cmid] = (
            pad2_ref[dy:dy + Hh, dx:dx + Wh, :].reshape(HW, Cmid).astype(jnp.bfloat16))
    acc2 = jnp.dot(col2_ref[...], w2_ref[...],
                   preferred_element_type=jnp.float32)                       # (HW, CoutP)
    o_ref[0] = jnp.maximum(acc2 + b2_ref[...], 0.0)                          # lane-dense store


# --------------------------------- Down forward ---------------------------------
def down_forward(x_nchw, params):
    """Down.forward: MaxPool2d(2) -> (conv3x3+BN+ReLU) -> (conv3x3+BN+ReLU). NCHW in/out."""
    N, Cin, H, W = x_nchw.shape
    Hh, Wh = H // 2, W // 2
    HW = Hh * Wh
    Cmid = params["w1"].shape[-1]
    Cout = params["w2"].shape[-1]
    CoutP = _round_up(Cout, 128)          # pad output channels to a full lane width

    # One fused XLA op: NCHW -> (N, 2, 2, Hh, Wh, Cin) parity-split channels-last, cast bf16.
    x6 = jnp.transpose(
        x_nchw.astype(jnp.bfloat16).reshape(N, Cin, Hh, 2, Wh, 2),
        (0, 3, 5, 2, 4, 1))

    # Fold BN scale into conv weights; reshape HWIO -> (9*Cin, Cout) im2col order; cast bf16.
    w1 = (params["w1"] * params["scale1"]).reshape(9 * Cin, Cmid).astype(jnp.bfloat16)
    b1 = params["bias1"].reshape(1, Cmid).astype(jnp.float32)
    w2f = (params["w2"] * params["scale2"]).reshape(9 * Cmid, Cout)
    w2 = jnp.pad(w2f, ((0, 0), (0, CoutP - Cout))).astype(jnp.bfloat16)
    b2 = jnp.pad(params["bias2"].reshape(1, Cout).astype(jnp.float32),
                 ((0, 0), (0, CoutP - Cout)))

    out = pl.pallas_call(
        _down_fused_kernel,
        out_shape=jax.ShapeDtypeStruct((N, HW, CoutP), jnp.float32),
        grid=(N,),
        in_specs=[
            pl.BlockSpec((1, 2, 2, Hh, Wh, Cin), lambda n: (n, 0, 0, 0, 0, 0)),
            pl.BlockSpec((9 * Cin, Cmid), lambda n: (0, 0)),
            pl.BlockSpec((1, Cmid), lambda n: (0, 0)),
            pl.BlockSpec((9 * Cmid, CoutP), lambda n: (0, 0)),
            pl.BlockSpec((1, CoutP), lambda n: (0, 0)),
        ],
        out_specs=pl.BlockSpec((1, HW, CoutP), lambda n: (n, 0, 0)),
        scratch_shapes=[
            pltpu.VMEM((Hh + 2, Wh + 2, Cin), jnp.float32),
            pltpu.VMEM((Hh + 2, Wh + 2, Cmid), jnp.float32),
            pltpu.VMEM((HW, 9 * Cin), jnp.bfloat16),
            pltpu.VMEM((HW, 9 * Cmid), jnp.bfloat16),
        ],
        compiler_params=pltpu.CompilerParams(dimension_semantics=("parallel",)),
    )(x6, w1, b1, w2, b2)

    # Drop the lane padding and return NCHW.
    out = out[:, :, :Cout].reshape(N, Hh, Wh, Cout)
    return jnp.transpose(out, (0, 3, 1, 2))


# ------------------------------- synthetic params --------------------------------
def init_down_params(key, in_channels, out_channels, groups=1):
    mid = out_channels * groups
    out = out_channels * groups
    k = jax.random.split(key, 12)
    eps = 1e-5

    def bn_fold(kg, kb, km, kv, c):
        gamma = 1.0 + 0.1 * jax.random.normal(kg, (c,), jnp.float32)
        beta = 0.1 * jax.random.normal(kb, (c,), jnp.float32)
        mean = 0.1 * jax.random.normal(km, (c,), jnp.float32)
        var = jnp.abs(jax.random.normal(kv, (c,), jnp.float32)) + 0.5
        scale = gamma / jnp.sqrt(var + eps)
        bias = beta - mean * scale
        return scale, bias

    w1 = 0.2 * jax.random.normal(k[0], (3, 3, in_channels, mid), jnp.float32)  # HWIO
    w2 = 0.2 * jax.random.normal(k[1], (3, 3, mid, out), jnp.float32)          # HWIO
    s1, b1 = bn_fold(k[2], k[3], k[4], k[5], mid)
    s2, b2 = bn_fold(k[8], k[9], k[10], k[11], out)
    return {"w1": w1, "scale1": s1, "bias1": b1,
            "w2": w2, "scale2": s2, "bias2": b2}


# ---------------------- pure-JAX reference (same bf16 recipe) ---------------------
def down_reference(x_nchw, params):
    x = jnp.transpose(x_nchw.astype(jnp.bfloat16), (0, 2, 3, 1))   # NHWC bf16
    N, H, W, C = x.shape
    p = x.reshape(N, H // 2, 2, W // 2, 2, C).max(axis=(2, 4))     # MaxPool2d(2)

    def conv_bn_relu(xin, w, scale, bias):
        wf = (w * scale).astype(jnp.bfloat16)
        y = jax.lax.conv_general_dilated(
            xin, wf, (1, 1), "SAME",
            dimension_numbers=("NHWC", "HWIO", "NHWC"),
            preferred_element_type=jnp.float32)
        return jnp.maximum(y + bias, 0.0)

    y1 = conv_bn_relu(p, params["w1"], params["scale1"], params["bias1"])
    y2 = conv_bn_relu(y1.astype(jnp.bfloat16), params["w2"], params["scale2"], params["bias2"])
    return jnp.transpose(y2, (0, 3, 1, 2))


if __name__ == "__main__":
    key = jax.random.PRNGKey(0)
    kx, kp = jax.random.split(key)

    N, Cin, H, W = 2, 4, 16, 16
    Cout = 8
    x = jax.random.normal(kx, (N, Cin, H, W), jnp.float32)          # NCHW like PyTorch
    params = init_down_params(kp, Cin, Cout)

    out = jax.block_until_ready(down_forward(x, params))
    ref = jax.block_until_ready(down_reference(x, params))

    assert out.shape == (N, Cout, H // 2, W // 2), out.shape
    assert jnp.allclose(out, ref, rtol=1e-2, atol=1e-2), "mismatch vs reference"
    print("KERNEL_OK")
</pallas_src>

<mosaic_0001>
module attributes {stable_mosaic.version = 11 : i64} {
  func.func @_down_fused_kernel(%arg0: i32, %arg1: memref<1x2x2x8x8x4xbf16, #tpu.memory_space<vmem>>, %arg2: memref<36x8xbf16, #tpu.memory_space<vmem>>, %arg3: memref<1x8xf32, #tpu.memory_space<vmem>>, %arg4: memref<72x128xbf16, #tpu.memory_space<vmem>>, %arg5: memref<1x128xf32, #tpu.memory_space<vmem>>, %arg6: memref<1x64x128xf32, #tpu.memory_space<vmem>>, %arg7: memref<10x10x4xf32, #tpu.memory_space<vmem>>, %arg8: memref<10x10x8xf32, #tpu.memory_space<vmem>>, %arg9: memref<64x36xbf16, #tpu.memory_space<vmem>>, %arg10: memref<64x72xbf16, #tpu.memory_space<vmem>>) attributes {dimension_semantics = [#tpu.dimension_semantics<parallel>], iteration_bounds = array<i64: 2>, scalar_prefetch = 0 : i64, scratch_operands = 4 : i64, tpu.core_type = #tpu.core_type<tc>, window_params = [{transform_indices = @transform_0, window_bounds = array<i64: 1, 2, 2, 8, 8, 4>}, {pipeline_mode = #tpu.pipeline_mode<synchronous>, transform_indices = @transform_1, window_bounds = array<i64: 36, 8>}, {pipeline_mode = #tpu.pipeline_mode<synchronous>, transform_indices = @transform_2, window_bounds = array<i64: 1, 8>}, {pipeline_mode = #tpu.pipeline_mode<synchronous>, transform_indices = @transform_3, window_bounds = array<i64: 72, 128>}, {pipeline_mode = #tpu.pipeline_mode<synchronous>, transform_indices = @transform_4, window_bounds = array<i64: 1, 128>}, {transform_indices = @transform_5, window_bounds = array<i64: 1, 64, 128>}]} {
    %c0 = arith.constant 0 : index
    %c0_0 = arith.constant 0 : index
    %c0_1 = arith.constant 0 : index
    %c0_2 = arith.constant 0 : index
    %c0_3 = arith.constant 0 : index
    %c0_4 = arith.constant 0 : index
    %0 = vector.load %arg1[%c0, %c0_0, %c0_1, %c0_2, %c0_3, %c0_4] : memref<1x2x2x8x8x4xbf16, #tpu.memory_space<vmem>>, vector<1x1x1x8x8x4xbf16>
    %1 = vector.shape_cast %0 : vector<1x1x1x8x8x4xbf16> to vector<8x8x4xbf16>
    %c0_5 = arith.constant 0 : index
    %c0_6 = arith.constant 0 : index
    %c1 = arith.constant 1 : index
    %c0_7 = arith.constant 0 : index
    %c0_8 = arith.constant 0 : index
    %c0_9 = arith.constant 0 : index
    %2 = vector.load %arg1[%c0_5, %c0_6, %c1, %c0_7, %c0_8, %c0_9] : memref<1x2x2x8x8x4xbf16, #tpu.memory_space<vmem>>, vector<1x1x1x8x8x4xbf16>
    %3 = vector.shape_cast %2 : vector<1x1x1x8x8x4xbf16> to vector<8x8x4xbf16>
    %4 = arith.maximumf %1, %3 : vector<8x8x4xbf16>
    %c0_10 = arith.constant 0 : index
    %c1_11 = arith.constant 1 : index
    %c0_12 = arith.constant 0 : index
    %c0_13 = arith.constant 0 : index
    %c0_14 = arith.constant 0 : index
    %c0_15 = arith.constant 0 : index
    %5 = vector.load %arg1[%c0_10, %c1_11, %c0_12, %c0_13, %c0_14, %c0_15] : memref<1x2x2x8x8x4xbf16, #tpu.memory_space<vmem>>, vector<1x1x1x8x8x4xbf16>
    %6 = vector.shape_cast %5 : vector<1x1x1x8x8x4xbf16> to vector<8x8x4xbf16>
    %c0_16 = arith.constant 0 : index
    %c1_17 = arith.constant 1 : index
    %c1_18 = arith.constant 1 : index
    %c0_19 = arith.constant 0 : index
    %c0_20 = arith.constant 0 : index
    %c0_21 = arith.constant 0 : index
    %7 = vector.load %arg1[%c0_16, %c1_17, %c1_18, %c0_19, %c0_20, %c0_21] : memref<1x2x2x8x8x4xbf16, #tpu.memory_space<vmem>>, vector<1x1x1x8x8x4xbf16>
    %8 = vector.shape_cast %7 : vector<1x1x1x8x8x4xbf16> to vector<8x8x4xbf16>
    %9 = arith.maximumf %6, %8 : vector<8x8x4xbf16>
    %10 = arith.maximumf %4, %9 : vector<8x8x4xbf16>
    %cst = arith.constant 0.000000e+00 : f32
    %11 = vector.broadcast %cst : f32 to vector<10x10x4xf32>
    %c0_22 = arith.constant 0 : index
    %c0_23 = arith.constant 0 : index
    %c0_24 = arith.constant 0 : index
    %12 = vector.load %arg7[%c0_22, %c0_23, %c0_24] : memref<10x10x4xf32, #tpu.memory_space<vmem>>, vector<10x10x4xf32>
    tpu.vector_store %arg7[%c0_22, %c0_23, %c0_24], %11 {strides = array<i32>} : memref<10x10x4xf32, #tpu.memory_space<vmem>>, vector<10x10x4xf32>,
    %13 = arith.extf %10 : vector<8x8x4xbf16> to vector<8x8x4xf32>
    %c1_25 = arith.constant 1 : index
    %c1_26 = arith.constant 1 : index
    %c0_27 = arith.constant 0 : index
    %14 = vector.load %arg7[%c1_25, %c1_26, %c0_27] : memref<10x10x4xf32, #tpu.memory_space<vmem>>, vector<8x8x4xf32>
    tpu.vector_store %arg7[%c1_25, %c1_26, %c0_27], %13 {strides = array<i32>} : memref<10x10x4xf32, #tpu.memory_space<vmem>>, vector<8x8x4xf32>,
    %c0_28 = arith.constant 0 : index
    %c0_29 = arith.constant 0 : index
    %c0_30 = arith.constant 0 : index
    %15 = vector.load %arg7[%c0_28, %c0_29, %c0_30] : memref<10x10x4xf32, #tpu.memory_space<vmem>>, vector<8x8x4xf32>
    %16 = vector.shape_cast %15 : vector<8x8x4xf32> to vector<64x4xf32>
    %17 = arith.truncf %16 : vector<64x4xf32> to vector<64x4xbf16>
    %c0_31 = arith.constant 0 : index
    %c0_32 = arith.constant 0 : index
    %18 = vector.load %arg9[%c0_31, %c0_32] : memref<64x36xbf16, #tpu.memory_space<vmem>>, vector<64x4xbf16>
    tpu.vector_store %arg9[%c0_31, %c0_32], %17 {strides = array<i32>} : memref<64x36xbf16, #tpu.memory_space<vmem>>, vector<64x4xbf16>,
    %c0_33 = arith.constant 0 : index
    %c1_34 = arith.constant 1 : index
    %c0_35 = arith.constant 0 : index
    %19 = vector.load %arg7[%c0_33, %c1_34, %c0_35] : memref<10x10x4xf32, #tpu.memory_space<vmem>>, vector<8x8x4xf32>
    %20 = vector.shape_cast %19 : vector<8x8x4xf32> to vector<64x4xf32>
    %21 = arith.truncf %20 : vector<64x4xf32> to vector<64x4xbf16>
    %c0_36 = arith.constant 0 : index
    %c4 = arith.constant 4 : index
    %22 = vector.load %arg9[%c0_36, %c4] : memref<64x36xbf16, #tpu.memory_space<vmem>>, vector<64x4xbf16>
    tpu.vector_store %arg9[%c0_36, %c4], %21 {strides = array<i32>} : memref<64x36xbf16, #tpu.memory_space<vmem>>, vector<64x4xbf16>,
    %c0_37 = arith.constant 0 : index
    %c2 = arith.constant 2 : index
    %c0_38 = arith.constant 0 : index
    %23 = vector.load %arg7[%c0_37, %c2, %c0_38] : memref<10x10x4xf32, #tpu.memory_space<vmem>>, vector<8x8x4xf32>
    %24 = vector.shape_cast %23 : vector<8x8x4xf32> to vector<64x4xf32>
    %25 = arith.truncf %24 : vector<64x4xf32> to vector<64x4xbf16>
    %c0_39 = arith.constant 0 : index
    %c8 = arith.constant 8 : index
    %26 = vector.load %arg9[%c0_39, %c8] : memref<64x36xbf16, #tpu.memory_space<vmem>>, vector<64x4xbf16>
    tpu.vector_store %arg9[%c0_39, %c8], %25 {strides = array<i32>} : memref<64x36xbf16, #tpu.memory_space<vmem>>, vector<64x4xbf16>,
    %c1_40 = arith.constant 1 : index
    %c0_41 = arith.constant 0 : index
    %c0_42 = arith.constant 0 : index
    %27 = vector.load %arg7[%c1_40, %c0_41, %c0_42] : memref<10x10x4xf32, #tpu.memory_space<vmem>>, vector<8x8x4xf32>
    %28 = vector.shape_cast %27 : vector<8x8x4xf32> to vector<64x4xf32>
    %29 = arith.truncf %28 : vector<64x4xf32> to vector<64x4xbf16>
    %c0_43 = arith.constant 0 : index
    %c12 = arith.constant 12 : index
    %30 = vector.load %arg9[%c0_43, %c12] : memref<64x36xbf16, #tpu.memory_space<vmem>>, vector<64x4xbf16>
    tpu.vector_store %arg9[%c0_43, %c12], %29 {strides = array<i32>} : memref<64x36xbf16, #tpu.memory_space<vmem>>, vector<64x4xbf16>,
    %c1_44 = arith.constant 1 : index
    %c1_45 = arith.constant 1 : index
    %c0_46 = arith.constant 0 : index
    %31 = vector.load %arg7[%c1_44, %c1_45, %c0_46] : memref<10x10x4xf32, #tpu.memory_space<vmem>>, vector<8x8x4xf32>
    %32 = vector.shape_cast %31 : vector<8x8x4xf32> to vector<64x4xf32>
    %33 = arith.truncf %32 : vector<64x4xf32> to vector<64x4xbf16>
    %c0_47 = arith.constant 0 : index
    %c16 = arith.constant 16 : index
    %34 = vector.load %arg9[%c0_47, %c16] : memref<64x36xbf16, #tpu.memory_space<vmem>>, vector<64x4xbf16>
    tpu.vector_store %arg9[%c0_47, %c16], %33 {strides = array<i32>} : memref<64x36xbf16, #tpu.memory_space<vmem>>, vector<64x4xbf16>,
    %c1_48 = arith.constant 1 : index
    %c2_49 = arith.constant 2 : index
    %c0_50 = arith.constant 0 : index
    %35 = vector.load %arg7[%c1_48, %c2_49, %c0_50] : memref<10x10x4xf32, #tpu.memory_space<vmem>>, vector<8x8x4xf32>
    %36 = vector.shape_cast %35 : vector<8x8x4xf32> to vector<64x4xf32>
    %37 = arith.truncf %36 : vector<64x4xf32> to vector<64x4xbf16>
    %c0_51 = arith.constant 0 : index
    %c20 = arith.constant 20 : index
    %38 = vector.load %arg9[%c0_51, %c20] : memref<64x36xbf16, #tpu.memory_space<vmem>>, vector<64x4xbf16>
    tpu.vector_store %arg9[%c0_51, %c20], %37 {strides = array<i32>} : memref<64x36xbf16, #tpu.memory_space<vmem>>, vector<64x4xbf16>,
    %c2_52 = arith.constant 2 : index
    %c0_53 = arith.constant 0 : index
    %c0_54 = arith.constant 0 : index
    %39 = vector.load %arg7[%c2_52, %c0_53, %c0_54] : memref<10x10x4xf32, #tpu.memory_space<vmem>>, vector<8x8x4xf32>
    %40 = vector.shape_cast %39 : vector<8x8x4xf32> to vector<64x4xf32>
    %41 = arith.truncf %40 : vector<64x4xf32> to vector<64x4xbf16>
    %c0_55 = arith.constant 0 : index
    %c24 = arith.constant 24 : index
    %42 = vector.load %arg9[%c0_55, %c24] : memref<64x36xbf16, #tpu.memory_space<vmem>>, vector<64x4xbf16>
    tpu.vector_store %arg9[%c0_55, %c24], %41 {strides = array<i32>} : memref<64x36xbf16, #tpu.memory_space<vmem>>, vector<64x4xbf16>,
    %c2_56 = arith.constant 2 : index
    %c1_57 = arith.constant 1 : index
    %c0_58 = arith.constant 0 : index
    %43 = vector.load %arg7[%c2_56, %c1_57, %c0_58] : memref<10x10x4xf32, #tpu.memory_space<vmem>>, vector<8x8x4xf32>
    %44 = vector.shape_cast %43 : vector<8x8x4xf32> to vector<64x4xf32>
    %45 = arith.truncf %44 : vector<64x4xf32> to vector<64x4xbf16>
    %c0_59 = arith.constant 0 : index
    %c28 = arith.constant 28 : index
    %46 = vector.load %arg9[%c0_59, %c28] : memref<64x36xbf16, #tpu.memory_space<vmem>>, vector<64x4xbf16>
    tpu.vector_store %arg9[%c0_59, %c28], %45 {strides = array<i32>} : memref<64x36xbf16, #tpu.memory_space<vmem>>, vector<64x4xbf16>,
    %c2_60 = arith.constant 2 : index
    %c2_61 = arith.constant 2 : index
    %c0_62 = arith.constant 0 : index
    %47 = vector.load %arg7[%c2_60, %c2_61, %c0_62] : memref<10x10x4xf32, #tpu.memory_space<vmem>>, vector<8x8x4xf32>
    %48 = vector.shape_cast %47 : vector<8x8x4xf32> to vector<64x4xf32>
    %49 = arith.truncf %48 : vector<64x4xf32> to vector<64x4xbf16>
    %c0_63 = arith.constant 0 : index
    %c32 = arith.constant 32 : index
    %50 = vector.load %arg9[%c0_63, %c32] : memref<64x36xbf16, #tpu.memory_space<vmem>>, vector<64x4xbf16>
    tpu.vector_store %arg9[%c0_63, %c32], %49 {strides = array<i32>} : memref<64x36xbf16, #tpu.memory_space<vmem>>, vector<64x4xbf16>,
    %c0_64 = arith.constant 0 : index
    %c0_65 = arith.constant 0 : index
    %51 = vector.load %arg9[%c0_64, %c0_65] : memref<64x36xbf16, #tpu.memory_space<vmem>>, vector<64x36xbf16>
    %c0_66 = arith.constant 0 : index
    %c0_67 = arith.constant 0 : index
    %52 = vector.load %arg2[%c0_66, %c0_67] : memref<36x8xbf16, #tpu.memory_space<vmem>>, vector<36x8xbf16>
    %cst_68 = arith.constant dense<0.000000e+00> : vector<64x8xf32>
    %53 = tpu.matmul %51, %52, %cst_68 {dimension_numbers = #tpu.dot_dimension_numbers<[1], [0], [0], [1], [0, 0, 1, 1], [], []>} : vector<64x36xbf16>, vector<36x8xbf16>, vector<64x8xf32> -> vector<64x8xf32>
    %c0_69 = arith.constant 0 : index
    %c0_70 = arith.constant 0 : index
    %54 = vector.load %arg3[%c0_69, %c0_70] : memref<1x8xf32, #tpu.memory_space<vmem>>, vector<1x8xf32>
    %55 = vector.broadcast %54 : vector<1x8xf32> to vector<64x8xf32>
    %56 = arith.addf %53, %55 : vector<64x8xf32>
    %cst_71 = arith.constant 0.000000e+00 : f32
    %57 = vector.broadcast %cst_71 : f32 to vector<64x8xf32>
    %58 = arith.maximumf %56, %57 : vector<64x8xf32>
    %cst_72 = arith.constant 0.000000e+00 : f32
    %59 = vector.broadcast %cst_72 : f32 to vector<10x10x8xf32>
    %c0_73 = arith.constant 0 : index
    %c0_74 = arith.constant 0 : index
    %c0_75 = arith.constant 0 : index
    %60 = vector.load %arg8[%c0_73, %c0_74, %c0_75] : memref<10x10x8xf32, #tpu.memory_space<vmem>>, vector<10x10x8xf32>
    tpu.vector_store %arg8[%c0_73, %c0_74, %c0_75], %59 {strides = array<i32>} : memref<10x10x8xf32, #tpu.memory_space<vmem>>, vector<10x10x8xf32>,
    %61 = vector.shape_cast %58 : vector<64x8xf32> to vector<8x8x8xf32>
    %c1_76 = arith.constant 1 : index
    %c1_77 = arith.constant 1 : index
    %c0_78 = arith.constant 0 : index
    %62 = vector.load %arg8[%c1_76, %c1_77, %c0_78] : memref<10x10x8xf32, #tpu.memory_space<vmem>>, vector<8x8x8xf32>
    tpu.vector_store %arg8[%c1_76, %c1_77, %c0_78], %61 {strides = array<i32>} : memref<10x10x8xf32, #tpu.memory_space<vmem>>, vector<8x8x8xf32>,
    %c0_79 = arith.constant 0 : index
    %c0_80 = arith.constant 0 : index
    %c0_81 = arith.constant 0 : index
    %63 = vector.load %arg8[%c0_79, %c0_80, %c0_81] : memref<10x10x8xf32, #tpu.memory_space<vmem>>, vector<8x8x8xf32>
    %64 = vector.shape_cast %63 : vector<8x8x8xf32> to vector<64x8xf32>
    %65 = arith.truncf %64 : vector<64x8xf32> to vector<64x8xbf16>
    %c0_82 = arith.constant 0 : index
    %c0_83 = arith.constant 0 : index
    %66 = vector.load %arg10[%c0_82, %c0_83] : memref<64x72xbf16, #tpu.memory_space<vmem>>, vector<64x8xbf16>
    tpu.vector_store %arg10[%c0_82, %c0_83], %65 {strides = array<i32>} : memref<64x72xbf16, #tpu.memory_space<vmem>>, vector<64x8xbf16>,
    %c0_84 = arith.constant 0 : index
    %c1_85 = arith.constant 1 : index
    %c0_86 = arith.constant 0 : index
    %67 = vector.load %arg8[%c0_84, %c1_85, %c0_86] : memref<10x10x8xf32, #tpu.memory_space<vmem>>, vector<8x8x8xf32>
    %68 = vector.shape_cast %67 : vector<8x8x8xf32> to vector<64x8xf32>
    %69 = arith.truncf %68 : vector<64x8xf32> to vector<64x8xbf16>
    %c0_87 = arith.constant 0 : index
    %c8_88 = arith.constant 8 : index
    %70 = vector.load %arg10[%c0_87, %c8_88] : memref<64x72xbf16, #tpu.memory_space<vmem>>, vector<64x8xbf16>
    tpu.vector_store %arg10[%c0_87, %c8_88], %69 {strides = array<i32>} : memref<64x72xbf16, #tpu.memory_space<vmem>>, vector<64x8xbf16>,
    %c0_89 = arith.constant 0 : index
    %c2_90 = arith.constant 2 : index
    %c0_91 = arith.constant 0 : index
    %71 = vector.load %arg8[%c0_89, %c2_90, %c0_91] : memref<10x10x8xf32, #tpu.memory_space<vmem>>, vector<8x8x8xf32>
    %72 = vector.shape_cast %71 : vector<8x8x8xf32> to vector<64x8xf32>
    %73 = arith.truncf %72 : vector<64x8xf32> to vector<64x8xbf16>
    %c0_92 = arith.constant 0 : index
    %c16_93 = arith.constant 16 : index
    %74 = vector.load %arg10[%c0_92, %c16_93] : memref<64x72xbf16, #tpu.memory_space<vmem>>, vector<64x8xbf16>
    tpu.vector_store %arg10[%c0_92, %c16_93], %73 {strides = array<i32>} : memref<64x72xbf16, #tpu.memory_space<vmem>>, vector<64x8xbf16>,
    %c1_94 = arith.constant 1 : index
    %c0_95 = arith.constant 0 : index
    %c0_96 = arith.constant 0 : index
    %75 = vector.load %arg8[%c1_94, %c0_95, %c0_96] : memref<10x10x8xf32, #tpu.memory_space<vmem>>, vector<8x8x8xf32>
    %76 = vector.shape_cast %75 : vector<8x8x8xf32> to vector<64x8xf32>
    %77 = arith.truncf %76 : vector<64x8xf32> to vector<64x8xbf16>
    %c0_97 = arith.constant 0 : index
    %c24_98 = arith.constant 24 : index
    %78 = vector.load %arg10[%c0_97, %c24_98] : memref<64x72xbf16, #tpu.memory_space<vmem>>, vector<64x8xbf16>
    tpu.vector_store %arg10[%c0_97, %c24_98], %77 {strides = array<i32>} : memref<64x72xbf16, #tpu.memory_space<vmem>>, vector<64x8xbf16>,
    %c1_99 = arith.constant 1 : index
    %c1_100 = arith.constant 1 : index
    %c0_101 = arith.constant 0 : index
    %79 = vector.load %arg8[%c1_99, %c1_100, %c0_101] : memref<10x10x8xf32, #tpu.memory_space<vmem>>, vector<8x8x8xf32>
    %80 = vector.shape_cast %79 : vector<8x8x8xf32> to vector<64x8xf32>
    %81 = arith.truncf %80 : vector<64x8xf32> to vector<64x8xbf16>
    %c0_102 = arith.constant 0 : index
    %c32_103 = arith.constant 32 : index
    %82 = vector.load %arg10[%c0_102, %c32_103] : memref<64x72xbf16, #tpu.memory_space<vmem>>, vector<64x8xbf16>
    tpu.vector_store %arg10[%c0_102, %c32_103], %81 {strides = array<i32>} : memref<64x72xbf16, #tpu.memory_space<vmem>>, vector<64x8xbf16>,
    %c1_104 = arith.constant 1 : index
    %c2_105 = arith.constant 2 : index
    %c0_106 = arith.constant 0 : index
    %83 = vector.load %arg8[%c1_104, %c2_105, %c0_106] : memref<10x10x8xf32, #tpu.memory_space<vmem>>, vector<8x8x8xf32>
    %84 = vector.shape_cast %83 : vector<8x8x8xf32> to vector<64x8xf32>
    %85 = arith.truncf %84 : vector<64x8xf32> to vector<64x8xbf16>
    %c0_107 = arith.constant 0 : index
    %c40 = arith.constant 40 : index
    %86 = vector.load %arg10[%c0_107, %c40] : memref<64x72xbf16, #tpu.memory_space<vmem>>, vector<64x8xbf16>
    tpu.vector_store %arg10[%c0_107, %c40], %85 {strides = array<i32>} : memref<64x72xbf16, #tpu.memory_space<vmem>>, vector<64x8xbf16>,
    %c2_108 = arith.constant 2 : index
    %c0_109 = arith.constant 0 : index
    %c0_110 = arith.constant 0 : index
    %87 = vector.load %arg8[%c2_108, %c0_109, %c0_110] : memref<10x10x8xf32, #tpu.memory_space<vmem>>, vector<8x8x8xf32>
    %88 = vector.shape_cast %87 : vector<8x8x8xf32> to vector<64x8xf32>
    %89 = arith.truncf %88 : vector<64x8xf32> to vector<64x8xbf16>
    %c0_111 = arith.constant 0 : index
    %c48 = arith.constant 48 : index
    %90 = vector.load %arg10[%c0_111, %c48] : memref<64x72xbf16, #tpu.memory_space<vmem>>, vector<64x8xbf16>
    tpu.vector_store %arg10[%c0_111, %c48], %89 {strides = array<i32>} : memref<64x72xbf16, #tpu.memory_space<vmem>>, vector<64x8xbf16>,
    %c2_112 = arith.constant 2 : index
    %c1_113 = arith.constant 1 : index
    %c0_114 = arith.constant 0 : index
    %91 = vector.load %arg8[%c2_112, %c1_113, %c0_114] : memref<10x10x8xf32, #tpu.memory_space<vmem>>, vector<8x8x8xf32>
    %92 = vector.shape_cast %91 : vector<8x8x8xf32> to vector<64x8xf32>
    %93 = arith.truncf %92 : vector<64x8xf32> to vector<64x8xbf16>
    %c0_115 = arith.constant 0 : index
    %c56 = arith.constant 56 : index
    %94 = vector.load %arg10[%c0_115, %c56] : memref<64x72xbf16, #tpu.memory_space<vmem>>, vector<64x8xbf16>
    tpu.vector_store %arg10[%c0_115, %c56], %93 {strides = array<i32>} : memref<64x72xbf16, #tpu.memory_space<vmem>>, vector<64x8xbf16>,
    %c2_116 = arith.constant 2 : index
    %c2_117 = arith.constant 2 : index
    %c0_118 = arith.constant 0 : index
    %95 = vector.load %arg8[%c2_116, %c2_117, %c0_118] : memref<10x10x8xf32, #tpu.memory_space<vmem>>, vector<8x8x8xf32>
    %96 = vector.shape_cast %95 : vector<8x8x8xf32> to vector<64x8xf32>
    %97 = arith.truncf %96 : vector<64x8xf32> to vector<64x8xbf16>
    %c0_119 = arith.constant 0 : index
    %c64 = arith.constant 64 : index
    %98 = vector.load %arg10[%c0_119, %c64] : memref<64x72xbf16, #tpu.memory_space<vmem>>, vector<64x8xbf16>
    tpu.vector_store %arg10[%c0_119, %c64], %97 {strides = array<i32>} : memref<64x72xbf16, #tpu.memory_space<vmem>>, vector<64x8xbf16>,
    %c0_120 = arith.constant 0 : index
    %c0_121 = arith.constant 0 : index
    %99 = vector.load %arg10[%c0_120, %c0_121] : memref<64x72xbf16, #tpu.memory_space<vmem>>, vector<64x72xbf16>
    %c0_122 = arith.constant 0 : index
    %c0_123 = arith.constant 0 : index
    %100 = vector.load %arg4[%c0_122, %c0_123] : memref<72x128xbf16, #tpu.memory_space<vmem>>, vector<72x128xbf16>
    %cst_124 = arith.constant dense<0.000000e+00> : vector<64x128xf32>
    %101 = tpu.matmul %99, %100, %cst_124 {dimension_numbers = #tpu.dot_dimension_numbers<[1], [0], [0], [1], [0, 0, 1, 1], [], []>} : vector<64x72xbf16>, vector<72x128xbf16>, vector<64x128xf32> -> vector<64x128xf32>
    %c0_125 = arith.constant 0 : index
    %c0_126 = arith.constant 0 : index
    %102 = vector.load %arg5[%c0_125, %c0_126] : memref<1x128xf32, #tpu.memory_space<vmem>>, vector<1x128xf32>
    %103 = vector.broadcast %102 : vector<1x128xf32> to vector<64x128xf32>
    %104 = arith.addf %101, %103 : vector<64x128xf32>
    %cst_127 = arith.constant 0.000000e+00 : f32
    %105 = vector.broadcast %cst_127 : f32 to vector<64x128xf32>
    %106 = arith.maximumf %104, %105 : vector<64x128xf32>
    %c0_128 = arith.constant 0 : index
    %c0_129 = arith.constant 0 : index
    %c0_130 = arith.constant 0 : index
    %107 = vector.load %arg6[%c0_128, %c0_129, %c0_130] : memref<1x64x128xf32, #tpu.memory_space<vmem>>, vector<1x64x128xf32>
    %108 = vector.shape_cast %107 : vector<1x64x128xf32> to vector<64x128xf32>
    %109 = vector.shape_cast %106 : vector<64x128xf32> to vector<1x64x128xf32>
    tpu.vector_store %arg6[%c0_128, %c0_129, %c0_130], %109 {strides = array<i32>} : memref<1x64x128xf32, #tpu.memory_space<vmem>>, vector<1x64x128xf32>,
    return
  }
  func.func @transform_0(%arg0: i32) -> (i32, i32, i32, i32, i32, i32) {
    %c0_i32 = arith.constant 0 : i32
    %c0_i32_0 = arith.constant 0 : i32
    %c0_i32_1 = arith.constant 0 : i32
    %c0_i32_2 = arith.constant 0 : i32
    %c0_i32_3 = arith.constant 0 : i32
    %c0_i32_4 = arith.constant 0 : i32
    return %arg0, %c0_i32, %c0_i32_0, %c0_i32_1, %c0_i32_2, %c0_i32_3 : i32, i32, i32, i32, i32, i32
  }
  func.func @transform_1(%arg0: i32) -> (i32, i32) {
    %c0_i32 = arith.constant 0 : i32
    %c0_i32_0 = arith.constant 0 : i32
    %c0_i32_1 = arith.constant 0 : i32
    return %c0_i32, %c0_i32_0 : i32, i32
  }
  func.func @transform_2(%arg0: i32) -> (i32, i32) {
    %c0_i32 = arith.constant 0 : i32
    %c0_i32_0 = arith.constant 0 : i32
    %c0_i32_1 = arith.constant 0 : i32
    return %c0_i32, %c0_i32_0 : i32, i32
  }
  func.func @transform_3(%arg0: i32) -> (i32, i32) {
    %c0_i32 = arith.constant 0 : i32
    %c0_i32_0 = arith.constant 0 : i32
    %c0_i32_1 = arith.constant 0 : i32
    return %c0_i32, %c0_i32_0 : i32, i32
  }
  func.func @transform_4(%arg0: i32) -> (i32, i32) {
    %c0_i32 = arith.constant 0 : i32
    %c0_i32_0 = arith.constant 0 : i32
    %c0_i32_1 = arith.constant 0 : i32
    return %c0_i32, %c0_i32_0 : i32, i32
  }
  func.func @transform_5(%arg0: i32) -> (i32, i32, i32) {
    %c0_i32 = arith.constant 0 : i32
    %c0_i32_0 = arith.constant 0 : i32
    %c0_i32_1 = arith.constant 0 : i32
    return %arg0, %c0_i32, %c0_i32_0 : i32, i32, i32
  }
}

</mosaic_0001>

<llo_original>
// kernel: tpu_custom_call.1
$region0: #{tpu_custom_call.1}
  #allocation0 [shape = 'u32[]', space=smem, size = 0x4, offset = 0x4, fixed_abs, tag = 'smem constant byte address 0x4 - core index']
  #allocation1 [shape = 'u32[144,128]{1,0:T(1,128)}', space=vmem, size = 0x12000, scoped, tag = 'internal scratch']
  #allocation2 [shape = 'f32[10,10,4]{2,1,0:T(8,128)}', space=vmem, size = 0x14000, scoped, tag = 'scratch operand']
  #allocation3 [shape = 'f32[10,10,8]{2,1,0:T(8,128)}', space=vmem, size = 0x14000, scoped, tag = 'scratch operand']
  #allocation4 [shape = 'bf16[64,36]{1,0:T(16,128)(2,1)}', space=vmem, size = 0x4000, scoped, tag = 'scratch operand']
  #allocation5 [shape = 'bf16[64,72]{1,0:T(16,128)(2,1)}', space=vmem, size = 0x4000, scoped, tag = 'scratch operand']
  %s0 = inlined_call_operand.vmem [shape: bf16[2,2,2,8,8,4], index: 0, kind: input, shape index: {}]
  %s1 = inlined_call_operand.vmem [shape: bf16[36,8], index: 1, kind: input, shape index: {}]
  %s2 = inlined_call_operand.vmem [shape: f32[1,8], index: 2, kind: input, shape index: {}]
  %s3 = inlined_call_operand.vmem [shape: bf16[72,128], index: 3, kind: input, shape index: {}]
  %s4 = inlined_call_operand.vmem [shape: f32[1,128], index: 4, kind: input, shape index: {}]
  %s5 = inlined_call_operand.hbm [shape: f32[2,64,128], index: 5, kind: output, shape index: {}]
  %s6 = sld [smem:[#allocation0]]
  $region53: #{tpu_custom_call.1} parent=0
    _
  %s8 = ssub.s32 1, %s6
  %s9 = scalar_select 0, %s8, %s6
  $region1: #{tpu_custom_call.1} parent=0
    #allocation6 [shape = 'u8[65536]{0}', space=vmem, size = 0x10000, scoped, tag = 'output window, operand 0']
    #allocation7 [shape = 's32[2]{0}', space=sflag, size = 0x8, scoped, tag = 'scoped memory for tpu_custom_call.1']
    %10 = vsyncpa [#allocation7], 0
    %s11 = scalar_lea.sflag [#allocation7], 1
    %12 = vsyncpa %s11, 0
    loop: start=0, step=1, limit=4
    $region2: #{tpu_custom_call.1} parent=1 // loop_pre_header
      _
    $region3: #{tpu_custom_call.1} parent=1 // loop_header
      %s14 = sphi 0, %s18
      %p15 = scmp.ge.s32.totalorder %s14, 4
      %s24 = sphi 0, %s26
      %s27 = sphi 0, %s24
      %s28 = sphi 0, %s27
      %s44 = sphi 0, %s28
      %s48 = sphi 0, %s48
      %s50 = sphi 0, %s48
      %s51 = sphi 0, %s50
      %s65 = sphi 0, %s51
      %s69 = sphi 0, %s69
      %s71 = sphi 0, %s69
      %s72 = sphi 0, %s71
      %s86 = sphi 0, %s72
      %s90 = sphi 0, %s90
      %s92 = sphi 0, %s90
      %s93 = sphi 0, %s92
      %s107 = sphi 0, %s93
      %s111 = sphi 0, %s111
      %s113 = sphi 0, %s111
      %s114 = sphi 0, %s113
      %s128 = sphi 0, %s114
      %s134 = sphi 0, %s136
      %s137 = sphi 0, %s134
      %s138 = sphi 0, %s137
      %s154 = sphi 0, %s138
    $region4: #{tpu_custom_call.1} parent=1 // loop_header_branch
      %17 = sbr.rel (%p15) target = $region8
    $region5: #{tpu_custom_call.1} parent=1 // loop_body
      %s19 = ssub.s32 %s14, 1
      %s20 = ssub.s32 %s14, 2
      %s21 = sadd.s32 %s14, 1
      %s22 = ssub.s32 %s14, %s21
      %p23 = scmp.eq.s32.totalorder %s22, 0
      %s25 = sadd.s32 %s24, 1
      %s26 = scalar_select %p23, %s24, %s25
      %p29 = pneg %p23
      %p30 = scmp.eq.s32.totalorder %s14, 1
      %p31 = por %p29, %p30
      %p32 = scmp.ne.s32.totalorder %s24, %s27
      %p33 = scmp.eq.s32.totalorder %s14, 0
      %p34 = por %p32, %p33
      %p35 = scmp.ne.s32.totalorder %s24, %s27
      %p36 = scmp.eq.s32.totalorder %s19, 1
      %p37 = por %p35, %p36
      %p38 = scmp.ne.s32.totalorder %s27, %s28
      %p39 = scmp.eq.s32.totalorder %s19, 0
      %p40 = por %p38, %p39
      %p41 = scmp.ne.s32.totalorder %s27, %s28
      %p42 = scmp.eq.s32.totalorder %s20, 1
      %p43 = por %p41, %p42
      %p45 = scmp.ne.s32.totalorder %s28, %s44
      %p46 = scmp.eq.s32.totalorder %s20, 0
      %p47 = por %p45, %p46
      %s49 = sadd.s32 %s48, 1
      %p52 = scmp.eq.s32.totalorder %s14, 1
      %p53 = scmp.ne.s32.totalorder %s48, %s50
      %p54 = scmp.eq.s32.totalorder %s14, 0
      %p55 = por %p53, %p54
      %p56 = scmp.ne.s32.totalorder %s48, %s50
      %p57 = scmp.eq.s32.totalorder %s19, 1
      %p58 = por %p56, %p57
      %p59 = scmp.ne.s32.totalorder %s50, %s51
      %p60 = scmp.eq.s32.totalorder %s19, 0
      %p61 = por %p59, %p60
      %p62 = scmp.ne.s32.totalorder %s50, %s51
      %p63 = scmp.eq.s32.totalorder %s20, 1
      %p64 = por %p62, %p63
      %p66 = scmp.ne.s32.totalorder %s51, %s65
      %p67 = scmp.eq.s32.totalorder %s20, 0
      %p68 = por %p66, %p67
      %s70 = sadd.s32 %s69, 1
      %p73 = scmp.eq.s32.totalorder %s14, 1
      %p74 = scmp.ne.s32.totalorder %s69, %s71
      %p75 = scmp.eq.s32.totalorder %s14, 0
      %p76 = por %p74, %p75
      %p77 = scmp.ne.s32.totalorder %s69, %s71
      %p78 = scmp.eq.s32.totalorder %s19, 1
      %p79 = por %p77, %p78
      %p80 = scmp.ne.s32.totalorder %s71, %s72
      %p81 = scmp.eq.s32.totalorder %s19, 0
      %p82 = por %p80, %p81
      %p83 = scmp.ne.s32.totalorder %s71, %s72
      %p84 = scmp.eq.s32.totalorder %s20, 1
      %p85 = por %p83, %p84
      %p87 = scmp.ne.s32.totalorder %s72, %s86
      %p88 = scmp.eq.s32.totalorder %s20, 0
      %p89 = por %p87, %p88
      %s91 = sadd.s32 %s90, 1
      %p94 = scmp.eq.s32.totalorder %s14, 1
      %p95 = scmp.ne.s32.totalorder %s90, %s92
      %p96 = scmp.eq.s32.totalorder %s14, 0
      %p97 = por %p95, %p96
      %p98 = scmp.ne.s32.totalorder %s90, %s92
      %p99 = scmp.eq.s32.totalorder %s19, 1
      %p100 = por %p98, %p99
      %p101 = scmp.ne.s32.totalorder %s92, %s93
      %p102 = scmp.eq.s32.totalorder %s19, 0
      %p103 = por %p101, %p102
      %p104 = scmp.ne.s32.totalorder %s92, %s93
      %p105 = scmp.eq.s32.totalorder %s20, 1
      %p106 = por %p104, %p105
      %p108 = scmp.ne.s32.totalorder %s93, %s107
      %p109 = scmp.eq.s32.totalorder %s20, 0
      %p110 = por %p108, %p109
      %s112 = sadd.s32 %s111, 1
      %p115 = scmp.eq.s32.totalorder %s14, 1
      %p116 = scmp.ne.s32.totalorder %s111, %s113
      %p117 = scmp.eq.s32.totalorder %s14, 0
      %p118 = por %p116, %p117
      %p119 = scmp.ne.s32.totalorder %s111, %s113
      %p120 = scmp.eq.s32.totalorder %s19, 1
      %p121 = por %p119, %p120
      %p122 = scmp.ne.s32.totalorder %s113, %s114
      %p123 = scmp.eq.s32.totalorder %s19, 0
      %p124 = por %p122, %p123
      %p125 = scmp.ne.s32.totalorder %s113, %s114
      %p126 = scmp.eq.s32.totalorder %s20, 1
      %p127 = por %p125, %p126
      %p129 = scmp.ne.s32.totalorder %s114, %s128
      %p130 = scmp.eq.s32.totalorder %s20, 0
      %p131 = por %p129, %p130
      %s132 = ssub.s32 %s14, %s21
      %p133 = scmp.eq.s32.totalorder %s132, 0
      %s135 = sadd.s32 %s134, 1
      %s136 = scalar_select %p133, %s134, %s135
      %p139 = pneg %p133
      %p140 = scmp.eq.s32.totalorder %s14, 1
      %p141 = por %p139, %p140
      %p142 = scmp.ne.s32.totalorder %s134, %s137
      %p143 = scmp.eq.s32.totalorder %s14, 0
      %p144 = por %p142, %p143
      %p145 = scmp.ne.s32.totalorder %s134, %s137
      %p146 = scmp.eq.s32.totalorder %s19, 1
      %p147 = por %p145, %p146
      %p148 = scmp.ne.s32.totalorder %s137, %s138
      %p149 = scmp.eq.s32.totalorder %s19, 0
      %p150 = por %p148, %p149
      %p151 = scmp.ne.s32.totalorder %s137, %s138
      %p152 = scmp.eq.s32.totalorder %s20, 1
      %p153 = por %p151, %p152
      %p155 = scmp.ne.s32.totalorder %s138, %s154
      %p156 = scmp.eq.s32.totalorder %s20, 0
      %p157 = por %p155, %p156
      %p158 = scmp.le.s32.totalorder 1, %s14
      %p159 = scmp.lt.s32.totalorder %s14, 3
      %p160 = pnand %p158, %p159
      %p161 = pneg %p160
      // Predicated region
      $region9: #{tpu_custom_call.1} parent=5 // pred_check
        _
      $region10: #{tpu_custom_call.1} parent=5 // pred_check_branch
        %163 = sbr.rel (%p160) target = $region12
      $region11: #{tpu_custom_call.1} parent=5 // pred_region
        %s164 = ssub.s32 %s14, 1
        // Predicated region
        $region13: #{tpu_custom_call.1} parent=11 // pred_check
          %p165 = pneg %p61
        $region14: #{tpu_custom_call.1} parent=11 // pred_check_branch
          %167 = sbr.rel (%p165) target = $region16
        $region15: #{tpu_custom_call.1} parent=11 // pred_region
          _
        $region16: #{tpu_custom_call.1} parent=11 // pred_fallthru
          _
        // Predicated region
        $region17: #{tpu_custom_call.1} parent=11 // pred_check
          %p168 = pneg %p82
        $region18: #{tpu_custom_call.1} parent=11 // pred_check_branch
          %170 = sbr.rel (%p168) target = $region20
        $region19: #{tpu_custom_call.1} parent=11 // pred_region
          _
        $region20: #{tpu_custom_call.1} parent=11 // pred_fallthru
          _
        // Predicated region
        $region21: #{tpu_custom_call.1} parent=11 // pred_check
          %p171 = pneg %p103
        $region22: #{tpu_custom_call.1} parent=11 // pred_check_branch
          %173 = sbr.rel (%p171) target = $region24
        $region23: #{tpu_custom_call.1} parent=11 // pred_region
          _
        $region24: #{tpu_custom_call.1} parent=11 // pred_fallthru
          _
        // Predicated region
        $region25: #{tpu_custom_call.1} parent=11 // pred_check
          %p174 = pneg %p124
        $region26: #{tpu_custom_call.1} parent=11 // pred_check_branch
          %176 = sbr.rel (%p174) target = $region28
        $region27: #{tpu_custom_call.1} parent=11 // pred_region
          _
        $region28: #{tpu_custom_call.1} parent=11 // pred_fallthru
          _
      $region12: #{tpu_custom_call.1} parent=5 // pred_fallthru
        _
      %p177 = scmp.lt.s32.totalorder %s14, 2
      // Predicated region
      $region29: #{tpu_custom_call.1} parent=5 // pred_check
        %p178 = pneg %p177
      $region30: #{tpu_custom_call.1} parent=5 // pred_check_branch
        %180 = sbr.rel (%p178) target = $region32
      $region31: #{tpu_custom_call.1} parent=5 // pred_region
        // Predicated region
        $region33: #{tpu_custom_call.1} parent=31 // pred_check
          %p181 = pneg %p34
        $region34: #{tpu_custom_call.1} parent=31 // pred_check_branch
          %183 = sbr.rel (%p181) target = $region36
        $region35: #{tpu_custom_call.1} parent=31 // pred_region
          %p184 = scmp.lt.s32.totalorder %s14, 1
          %s185 = scalar_select %p184, %s14, 1
          %s186 = smul.addr %s185, 32
          %s187 = smul.addr %s186, 4
          %s188 = scalar_lea.vmem %s0, %s187
        $region36: #{tpu_custom_call.1} parent=31 // pred_fallthru
          _
      $region32: #{tpu_custom_call.1} parent=5 // pred_fallthru
        _
      %p189 = scmp.le.s32.totalorder 1, %s14
      %p190 = scmp.lt.s32.totalorder %s14, 3
      %p191 = pnand %p189, %p190
      %p192 = pneg %p191
      // Predicated region
      $region37: #{tpu_custom_call.1} parent=5 // pred_check
        _
      $region38: #{tpu_custom_call.1} parent=5 // pred_check_branch
        %194 = sbr.rel (%p191) target = $region40
      $region39: #{tpu_custom_call.1} parent=5 // pred_region
        %s195 = ssub.s32 %s14, 1
        %p196 = scmp.lt.s32.totalorder %s19, 1
        %s197 = scalar_select %p196, %s19, 1
        %s198 = smul.addr %s197, 32
        %s199 = smul.addr %s198, 4
        %s200 = scalar_lea.vmem %s0, %s199
        %p201 = pneg %p40
        %p202 = pneg %p37
        %p203 = pneg %p61
        %p204 = pneg %p58
        %p205 = pneg %p82
        %p206 = pneg %p79
        %p207 = pneg %p103
        %p208 = pneg %p100
        %p209 = pneg %p124
        %p210 = pneg %p121
        %p211 = pneg %p150
        %p212 = pneg %p147
        %s213 = sand.u32 %s137, 1
        %s214 = scalar_lea.sflag [#allocation7], %s213
        %s215 = sand.u32 %s137, 1
        %s216 = smul.addr %s215, 64
        %s217 = scalar_lea.vmem [#allocation6], %s216
        %p218 = scmp.lt.s32.totalorder %s19, 1
        %s219 = scalar_select %p218, %s19, 1
        %s220 = smul.addr %s219, 32
        %s221 = smul.addr %s220, 4
        %s222 = scalar_lea.vmem %s0, %s221
        %v224 = vld [vmem:[%s222] sm:$0xf]
        %v225 = vld [vmem:[%s222 + $0x4] sm:$0xf]
        %v226 = vld [vmem:[%s222 + $0x8] sm:$0xf]
        %v227 = vld [vmem:[%s222 + $0xc] sm:$0xf]
        %v228 = vld [vmem:[%s222 + $0x10] sm:$0xf]
        %v229 = vld [vmem:[%s222 + $0x14] sm:$0xf]
        %v230 = vld [vmem:[%s222 + $0x18] sm:$0xf]
        %v231 = vld [vmem:[%s222 + $0x1c] sm:$0xf]
        %s232 = scalar_lea.vmem %s222, 32
        %v233 = vld [vmem:[%s232] sm:$0xf]
        %v234 = vld [vmem:[%s232 + $0x4] sm:$0xf]
        %v235 = vld [vmem:[%s232 + $0x8] sm:$0xf]
        %v236 = vld [vmem:[%s232 + $0xc] sm:$0xf]
        %v237 = vld [vmem:[%s232 + $0x10] sm:$0xf]
        %v238 = vld [vmem:[%s232 + $0x14] sm:$0xf]
        %v239 = vld [vmem:[%s232 + $0x18] sm:$0xf]
        %v240 = vld [vmem:[%s232 + $0x1c] sm:$0xf]
        %v241 = vmax.bf16 %v224, %v233
        %v242 = vmax.bf16 %v225, %v234
        %v243 = vmax.bf16 %v226, %v235
        %v244 = vmax.bf16 %v227, %v236
        %v245 = vmax.bf16 %v228, %v237
        %v246 = vmax.bf16 %v229, %v238
        %v247 = vmax.bf16 %v230, %v239
        %v248 = vmax.bf16 %v231, %v240
        %s249 = scalar_lea.vmem %s222, 64
        %v250 = vld [vmem:[%s249] sm:$0xf]
        %v251 = vld [vmem:[%s249 + $0x4] sm:$0xf]
        %v252 = vld [vmem:[%s249 + $0x8] sm:$0xf]
        %v253 = vld [vmem:[%s249 + $0xc] sm:$0xf]
        %v254 = vld [vmem:[%s249 + $0x10] sm:$0xf]
        %v255 = vld [vmem:[%s249 + $0x14] sm:$0xf]
        %v256 = vld [vmem:[%s249 + $0x18] sm:$0xf]
        %v257 = vld [vmem:[%s249 + $0x1c] sm:$0xf]
        %s258 = scalar_lea.vmem %s222, 96
        %v259 = vld [vmem:[%s258] sm:$0xf]
        %v260 = vld [vmem:[%s258 + $0x4] sm:$0xf]
        %v261 = vld [vmem:[%s258 + $0x8] sm:$0xf]
        %v262 = vld [vmem:[%s258 + $0xc] sm:$0xf]
        %v263 = vld [vmem:[%s258 + $0x10] sm:$0xf]
        %v264 = vld [vmem:[%s258 + $0x14] sm:$0xf]
        %v265 = vld [vmem:[%s258 + $0x18] sm:$0xf]
        %v266 = vld [vmem:[%s258 + $0x1c] sm:$0xf]
        %v267 = vmax.bf16 %v250, %v259
        %v268 = vmax.bf16 %v251, %v260
        %v269 = vmax.bf16 %v252, %v261
        %v270 = vmax.bf16 %v253, %v262
        %v271 = vmax.bf16 %v254, %v263
        %v272 = vmax.bf16 %v255, %v264
        %v273 = vmax.bf16 %v256, %v265
        %v274 = vmax.bf16 %v257, %v266
        %v275 = vmax.bf16 %v241, %v267
        %v276 = vmax.bf16 %v242, %v268
        %v277 = vmax.bf16 %v243, %v269
        %v278 = vmax.bf16 %v244, %v270
        %v279 = vmax.bf16 %v245, %v271
        %v280 = vmax.bf16 %v246, %v272
        %v281 = vmax.bf16 %v247, %v273
        %v282 = vmax.bf16 %v248, %v274
        %vm283 = vcmask 31744
        %284 = vst.msk [vmem:[#allocation2] sm:$0xff] %vm283, 0.0
        %vm285 = vcmask 25600
        %286 = vst.msk [vmem:[#allocation2 + $0x8] sm:$0x3] %vm285, 0.0
        %287 = vst.msk [vmem:[#allocation2 + $0x10] sm:$0xff] %vm283, 0.0
        %288 = vst.msk [vmem:[#allocation2 + $0x18] sm:$0x3] %vm285, 0.0
        %289 = vst.msk [vmem:[#allocation2 + $0x20] sm:$0xff] %vm283, 0.0
        %290 = vst.msk [vmem:[#allocation2 + $0x28] sm:$0x3] %vm285, 0.0
        %291 = vst.msk [vmem:[#allocation2 + $0x30] sm:$0xff] %vm283, 0.0
        %292 = vst.msk [vmem:[#allocation2 + $0x38] sm:$0x3] %vm285, 0.0
        %293 = vst.msk [vmem:[#allocation2 + $0x40] sm:$0xff] %vm283, 0.0
        %294 = vst.msk [vmem:[#allocation2 + $0x48] sm:$0x3] %vm285, 0.0
        %295 = vst.msk [vmem:[#allocation2 + $0x50] sm:$0xff] %vm283, 0.0
        %296 = vst.msk [vmem:[#allocation2 + $0x58] sm:$0x3] %vm285, 0.0
        %297 = vst.msk [vmem:[#allocation2 + $0x60] sm:$0xff] %vm283, 0.0
        %298 = vst.msk [vmem:[#allocation2 + $0x68] sm:$0x3] %vm285, 0.0
        %299 = vst.msk [vmem:[#allocation2 + $0x70] sm:$0xff] %vm283, 0.0
        %300 = vst.msk [vmem:[#allocation2 + $0x78] sm:$0x3] %vm285, 0.0
        %301 = vst.msk [vmem:[#allocation2 + $0x80] sm:$0xff] %vm283, 0.0
        %302 = vst.msk [vmem:[#allocation2 + $0x88] sm:$0x3] %vm285, 0.0
        %303 = vst.msk [vmem:[#allocation2 + $0x90] sm:$0xff] %vm283, 0.0
        %304 = vst.msk [vmem:[#allocation2 + $0x98] sm:$0x3] %vm285, 0.0
        %v305 = vunpack.c.l.bf16 %v275
        %v306 = vunpack.c.l.bf16 %v276
        %v307 = vunpack.c.l.bf16 %v277
        %v308 = vunpack.c.l.bf16 %v278
        %v309 = vunpack.c.l.bf16 %v279
        %v310 = vunpack.c.l.bf16 %v280
        %v311 = vunpack.c.l.bf16 %v281
        %v312 = vunpack.c.l.bf16 %v282
        %s313 = scalar_lea.vmem [#allocation2], 16
        %314 = vst.msk [vmem:[%s313 + $0x1] sm:$0xff] %vm283, %v305
        %315 = vst.msk [vmem:[%s313 + $0x11] sm:$0xff] %vm283, %v306
        %316 = vst.msk [vmem:[%s313 + $0x21] sm:$0xff] %vm283, %v307
        %317 = vst.msk [vmem:[%s313 + $0x31] sm:$0xff] %vm283, %v308
        %318 = vst.msk [vmem:[%s313 + $0x41] sm:$0xff] %vm283, %v309
        %319 = vst.msk [vmem:[%s313 + $0x51] sm:$0xff] %vm283, %v310
        %320 = vst.msk [vmem:[%s313 + $0x61] sm:$0xff] %vm283, %v311
        %321 = vst.msk [vmem:[%s313 + $0x71] sm:$0xff] %vm283, %v312
        %v322 = vld [vmem:[#allocation2] sm:$0xff]
        %v323 = vld [vmem:[#allocation2 + $0x10] sm:$0xff]
        %v324 = vld [vmem:[#allocation2 + $0x20] sm:$0xff]
        %v325 = vld [vmem:[#allocation2 + $0x30] sm:$0xff]
        %v326 = vld [vmem:[#allocation2 + $0x40] sm:$0xff]
        %v327 = vld [vmem:[#allocation2 + $0x50] sm:$0xff]
        %v328 = vld [vmem:[#allocation2 + $0x60] sm:$0xff]
        %v329 = vld [vmem:[#allocation2 + $0x70] sm:$0xff]
        %v330 = vpack.c.bf16 %v323, %v322
        %v331 = vpack.c.bf16 %v325, %v324
        %v332 = vpack.c.bf16 %v327, %v326
        %v333 = vpack.c.bf16 %v329, %v328
        %334 = vst.msk [vmem:[#allocation4] sm:$0xff] %vm283, %v330
        %335 = vst.msk [vmem:[#allocation4 + $0x8] sm:$0xff] %vm283, %v331
        %336 = vst.msk [vmem:[#allocation4 + $0x10] sm:$0xff] %vm283, %v332
        %337 = vst.msk [vmem:[#allocation4 + $0x18] sm:$0xff] %vm283, %v333
        %v338 = vld [vmem:[#allocation2 + $0x1] sm:$0xff]
        %v339 = vld [vmem:[#allocation2 + $0x11] sm:$0xff]
        %v340 = vld [vmem:[#allocation2 + $0x21] sm:$0xff]
        %v341 = vld [vmem:[#allocation2 + $0x31] sm:$0xff]
        %v342 = vld [vmem:[#allocation2 + $0x41] sm:$0xff]
        %v343 = vld [vmem:[#allocation2 + $0x51] sm:$0xff]
        %v344 = vld [vmem:[#allocation2 + $0x61] sm:$0xff]
        %v345 = vld [vmem:[#allocation2 + $0x71] sm:$0xff]
        %v346 = vpack.c.bf16 %v339, %v338
        %v347 = vpack.c.bf16 %v341, %v340
        %v348 = vpack.c.bf16 %v343, %v342
        %v349 = vpack.c.bf16 %v345, %v344
        %354 = vrot.lane.b32.xlu0 %v346, 4
        %v355 = vpop.permute.xlu0 %354
        %356 = vrot.lane.b32.xlu0 %v347, 4
        %v357 = vpop.permute.xlu0 %356
        %358 = vrot.lane.b32.xlu0 %v348, 4
        %v359 = vpop.permute.xlu0 %358
        %360 = vrot.lane.b32.xlu0 %v349, 4
        %v361 = vpop.permute.xlu0 %360
        %vm366 = vcmask 64544
        %367 = vst.msk [vmem:[#allocation4] sm:$0xff] %vm366, %v355
        %368 = vst.msk [vmem:[#allocation4 + $0x8] sm:$0xff] %vm366, %v357
        %369 = vst.msk [vmem:[#allocation4 + $0x10] sm:$0xff] %vm366, %v359
        %370 = vst.msk [vmem:[#allocation4 + $0x18] sm:$0xff] %vm366, %v361
        %v371 = vld [vmem:[#allocation2 + $0x2] sm:$0xff]
        %v372 = vld [vmem:[#allocation2 + $0x12] sm:$0xff]
        %v373 = vld [vmem:[#allocation2 + $0x22] sm:$0xff]
        %v374 = vld [vmem:[#allocation2 + $0x32] sm:$0xff]
        %v375 = vld [vmem:[#allocation2 + $0x42] sm:$0xff]
        %v376 = vld [vmem:[#allocation2 + $0x52] sm:$0xff]
        %v377 = vld [vmem:[#allocation2 + $0x62] sm:$0xff]
        %v378 = vld [vmem:[#allocation2 + $0x72] sm:$0xff]
        %v379 = vpack.c.bf16 %v372, %v371
        %v380 = vpack.c.bf16 %v374, %v373
        %v381 = vpack.c.bf16 %v376, %v375
        %v382 = vpack.c.bf16 %v378, %v377
        %387 = vrot.lane.b32.xlu0 %v379, 8
        %v388 = vpop.permute.xlu0 %387
        %389 = vrot.lane.b32.xlu0 %v380, 8
        %v390 = vpop.permute.xlu0 %389
        %391 = vrot.lane.b32.xlu0 %v381, 8
        %v392 = vpop.permute.xlu0 %391
        %393 = vrot.lane.b32.xlu0 %v382, 8
        %v394 = vpop.permute.xlu0 %393
        %vm399 = vcmask 97344
        %400 = vst.msk [vmem:[#allocation4] sm:$0xff] %vm399, %v388
        %401 = vst.msk [vmem:[#allocation4 + $0x8] sm:$0xff] %vm399, %v390
        %402 = vst.msk [vmem:[#allocation4 + $0x10] sm:$0xff] %vm399, %v392
        %403 = vst.msk [vmem:[#allocation4 + $0x18] sm:$0xff] %vm399, %v394
        %v404 = vld [vmem:[%s313] sm:$0xff]
        %v405 = vld [vmem:[%s313 + $0x10] sm:$0xff]
        %v406 = vld [vmem:[%s313 + $0x20] sm:$0xff]
        %v407 = vld [vmem:[%s313 + $0x30] sm:$0xff]
        %v408 = vld [vmem:[%s313 + $0x40] sm:$0xff]
        %v409 = vld [vmem:[%s313 + $0x50] sm:$0xff]
        %v410 = vld [vmem:[%s313 + $0x60] sm:$0xff]
        %v411 = vld [vmem:[%s313 + $0x70] sm:$0xff]
        %v412 = vpack.c.bf16 %v405, %v404
        %v413 = vpack.c.bf16 %v407, %v406
        %v414 = vpack.c.bf16 %v409, %v408
        %v415 = vpack.c.bf16 %v411, %v410
        %420 = vrot.lane.b32.xlu0 %v412, 12
        %v421 = vpop.permute.xlu0 %420
        %422 = vrot.lane.b32.xlu0 %v413, 12
        %v423 = vpop.permute.xlu0 %422
        %424 = vrot.lane.b32.xlu0 %v414, 12
        %v425 = vpop.permute.xlu0 %424
        %426 = vrot.lane.b32.xlu0 %v415, 12
        %v427 = vpop.permute.xlu0 %426
        %vm432 = vcmask 130144
        %433 = vst.msk [vmem:[#allocation4] sm:$0xff] %vm432, %v421
        %434 = vst.msk [vmem:[#allocation4 + $0x8] sm:$0xff] %vm432, %v423
        %435 = vst.msk [vmem:[#allocation4 + $0x10] sm:$0xff] %vm432, %v425
        %436 = vst.msk [vmem:[#allocation4 + $0x18] sm:$0xff] %vm432, %v427
        %v437 = vld [vmem:[%s313 + $0x1] sm:$0xff]
        %v438 = vld [vmem:[%s313 + $0x11] sm:$0xff]
        %v439 = vld [vmem:[%s313 + $0x21] sm:$0xff]
        %v440 = vld [vmem:[%s313 + $0x31] sm:$0xff]
        %v441 = vld [vmem:[%s313 + $0x41] sm:$0xff]
        %v442 = vld [vmem:[%s313 + $0x51] sm:$0xff]
        %v443 = vld [vmem:[%s313 + $0x61] sm:$0xff]
        %v444 = vld [vmem:[%s313 + $0x71] sm:$0xff]
        %v445 = vpack.c.bf16 %v438, %v437
        %v446 = vpack.c.bf16 %v440, %v439
        %v447 = vpack.c.bf16 %v442, %v441
        %v448 = vpack.c.bf16 %v444, %v443
        %453 = vrot.lane.b32.xlu0 %v445, 16
        %v454 = vpop.permute.xlu0 %453
        %455 = vrot.lane.b32.xlu0 %v446, 16
        %v456 = vpop.permute.xlu0 %455
        %457 = vrot.lane.b32.xlu0 %v447, 16
        %v458 = vpop.permute.xlu0 %457
        %459 = vrot.lane.b32.xlu0 %v448, 16
        %v460 = vpop.permute.xlu0 %459
        %vm465 = vcmask 162944
        %466 = vst.msk [vmem:[#allocation4] sm:$0xff] %vm465, %v454
        %467 = vst.msk [vmem:[#allocation4 + $0x8] sm:$0xff] %vm465, %v456
        %468 = vst.msk [vmem:[#allocation4 + $0x10] sm:$0xff] %vm465, %v458
        %469 = vst.msk [vmem:[#allocation4 + $0x18] sm:$0xff] %vm465, %v460
        %v470 = vld [vmem:[%s313 + $0x2] sm:$0xff]
        %v471 = vld [vmem:[%s313 + $0x12] sm:$0xff]
        %v472 = vld [vmem:[%s313 + $0x22] sm:$0xff]
        %v473 = vld [vmem:[%s313 + $0x32] sm:$0xff]
        %v474 = vld [vmem:[%s313 + $0x42] sm:$0xff]
        %v475 = vld [vmem:[%s313 + $0x52] sm:$0xff]
        %v476 = vld [vmem:[%s313 + $0x62] sm:$0xff]
        %v477 = vld [vmem:[%s313 + $0x72] sm:$0xff]
        %v478 = vpack.c.bf16 %v471, %v470
        %v479 = vpack.c.bf16 %v473, %v472
        %v480 = vpack.c.bf16 %v475, %v474
        %v481 = vpack.c.bf16 %v477, %v476
        %486 = vrot.lane.b32.xlu0 %v478, 20
        %v487 = vpop.permute.xlu0 %486
        %488 = vrot.lane.b32.xlu0 %v479, 20
        %v489 = vpop.permute.xlu0 %488
        %490 = vrot.lane.b32.xlu0 %v480, 20
        %v491 = vpop.permute.xlu0 %490
        %492 = vrot.lane.b32.xlu0 %v481, 20
        %v493 = vpop.permute.xlu0 %492
        %vm498 = vcmask 195744
        %499 = vst.msk [vmem:[#allocation4] sm:$0xff] %vm498, %v487
        %500 = vst.msk [vmem:[#allocation4 + $0x8] sm:$0xff] %vm498, %v489
        %501 = vst.msk [vmem:[#allocation4 + $0x10] sm:$0xff] %vm498, %v491
        %502 = vst.msk [vmem:[#allocation4 + $0x18] sm:$0xff] %vm498, %v493
        %s503 = scalar_lea.vmem [#allocation2], 32
        %v504 = vld [vmem:[%s503] sm:$0xff]
        %v505 = vld [vmem:[%s503 + $0x10] sm:$0xff]
        %v506 = vld [vmem:[%s503 + $0x20] sm:$0xff]
        %v507 = vld [vmem:[%s503 + $0x30] sm:$0xff]
        %v508 = vld [vmem:[%s503 + $0x40] sm:$0xff]
        %v509 = vld [vmem:[%s503 + $0x50] sm:$0xff]
        %v510 = vld [vmem:[%s503 + $0x60] sm:$0xff]
        %v511 = vld [vmem:[%s503 + $0x70] sm:$0xff]
        %v512 = vpack.c.bf16 %v505, %v504
        %v513 = vpack.c.bf16 %v507, %v506
        %v514 = vpack.c.bf16 %v509, %v508
        %v515 = vpack.c.bf16 %v511, %v510
        %520 = vrot.lane.b32.xlu0 %v512, 24
        %v521 = vpop.permute.xlu0 %520
        %522 = vrot.lane.b32.xlu0 %v513, 24
        %v523 = vpop.permute.xlu0 %522
        %524 = vrot.lane.b32.xlu0 %v514, 24
        %v525 = vpop.permute.xlu0 %524
        %526 = vrot.lane.b32.xlu0 %v515, 24
        %v527 = vpop.permute.xlu0 %526
        %vm532 = vcmask 228544
        %533 = vst.msk [vmem:[#allocation4] sm:$0xff] %vm532, %v521
        %534 = vst.msk [vmem:[#allocation4 + $0x8] sm:$0xff] %vm532, %v523
        %535 = vst.msk [vmem:[#allocation4 + $0x10] sm:$0xff] %vm532, %v525
        %536 = vst.msk [vmem:[#allocation4 + $0x18] sm:$0xff] %vm532, %v527
        %v537 = vld [vmem:[%s503 + $0x1] sm:$0xff]
        %v538 = vld [vmem:[%s503 + $0x11] sm:$0xff]
        %v539 = vld [vmem:[%s503 + $0x21] sm:$0xff]
        %v540 = vld [vmem:[%s503 + $0x31] sm:$0xff]
        %v541 = vld [vmem:[%s503 + $0x41] sm:$0xff]
        %v542 = vld [vmem:[%s503 + $0x51] sm:$0xff]
        %v543 = vld [vmem:[%s503 + $0x61] sm:$0xff]
        %v544 = vld [vmem:[%s503 + $0x71] sm:$0xff]
        %v545 = vpack.c.bf16 %v538, %v537
        %v546 = vpack.c.bf16 %v540, %v539
        %v547 = vpack.c.bf16 %v542, %v541
        %v548 = vpack.c.bf16 %v544, %v543
        %553 = vrot.lane.b32.xlu0 %v545, 28
        %v554 = vpop.permute.xlu0 %553
        %555 = vrot.lane.b32.xlu0 %v546, 28
        %v556 = vpop.permute.xlu0 %555
        %557 = vrot.lane.b32.xlu0 %v547, 28
        %v558 = vpop.permute.xlu0 %557
        %559 = vrot.lane.b32.xlu0 %v548, 28
        %v560 = vpop.permute.xlu0 %559
        %vm565 = vcmask 261344
        %566 = vst.msk [vmem:[#allocation4] sm:$0xff] %vm565, %v554
        %567 = vst.msk [vmem:[#allocation4 + $0x8] sm:$0xff] %vm565, %v556
        %568 = vst.msk [vmem:[#allocation4 + $0x10] sm:$0xff] %vm565, %v558
        %569 = vst.msk [vmem:[#allocation4 + $0x18] sm:$0xff] %vm565, %v560
        %v570 = vld [vmem:[%s503 + $0x2] sm:$0xff]
        %v571 = vld [vmem:[%s503 + $0x12] sm:$0xff]
        %v572 = vld [vmem:[%s503 + $0x22] sm:$0xff]
        %v573 = vld [vmem:[%s503 + $0x32] sm:$0xff]
        %v574 = vld [vmem:[%s503 + $0x42] sm:$0xff]
        %v575 = vld [vmem:[%s503 + $0x52] sm:$0xff]
        %v576 = vld [vmem:[%s503 + $0x62] sm:$0xff]
        %v577 = vld [vmem:[%s503 + $0x72] sm:$0xff]
        %v578 = vpack.c.bf16 %v571, %v570
        %v579 = vpack.c.bf16 %v573, %v572
        %v580 = vpack.c.bf16 %v575, %v574
        %v581 = vpack.c.bf16 %v577, %v576
        %586 = vrot.lane.b32.xlu0 %v578, 32
        %v587 = vpop.permute.xlu0 %586
        %588 = vrot.lane.b32.xlu0 %v579, 32
        %v589 = vpop.permute.xlu0 %588
        %590 = vrot.lane.b32.xlu0 %v580, 32
        %v591 = vpop.permute.xlu0 %590
        %592 = vrot.lane.b32.xlu0 %v581, 32
        %v593 = vpop.permute.xlu0 %592
        %vm598 = vcmask 294144
        %599 = vst.msk [vmem:[#allocation4] sm:$0xff] %vm598, %v587
        %600 = vst.msk [vmem:[#allocation4 + $0x8] sm:$0xff] %vm598, %v589
        %601 = vst.msk [vmem:[#allocation4 + $0x10] sm:$0xff] %vm598, %v591
        %602 = vst.msk [vmem:[#allocation4 + $0x18] sm:$0xff] %vm598, %v593
        %v603 = vld [vmem:[#allocation4] sm:$0xff]
        %v604 = vld [vmem:[#allocation4 + $0x8] sm:$0xff]
        %v605 = vld [vmem:[#allocation4 + $0x10] sm:$0xff]
        %v606 = vld [vmem:[#allocation4 + $0x18] sm:$0xff]
        %v607 = vld [vmem:[%s1] sm:$0xf]
        %v608 = vld [vmem:[%s1 + $0x4] sm:$0xf]
        %v609 = vld [vmem:[%s1 + $0x8] sm:$0xf]
        %v610 = vld [vmem:[%s1 + $0xc] sm:$0xf]
        %v611 = vld [vmem:[%s1 + $0x10] sm:$0x3]
        %v612 = vld [vmem:[%s2] sm:$0x1]
        %v614 = vlaneseq
        %v615 = vshrl.u32 %v614, 7
        %v616 = vsub.s32 0, %v615
        %v617 = vrot.slane %v612, %v616
        %v624 = vunpack.c.l.b16 %v607
        %v625 = vunpack.c.l.b16 %v608
        %v626 = vunpack.c.l.b16 %v609
        %v627 = vunpack.c.l.b16 %v610
        %v628 = vunpack.c.l.b16 %v611
        %v629 = vpack.c.b16 %v625, %v624
        %v630 = vpack.c.b16 %v627, %v626
        %v631 = vpack.c.b16 %v628, %v628
        %vm634 = vcmask 293888
        %v636 = vsel %vm634, %v603, 0
        %v639 = vsel %vm634, %v604, 0
        %v642 = vsel %vm634, %v605, 0
        %v645 = vsel %vm634, %v606, 0
        %vm647 = vcmask 1041408
        %v649 = vsel %vm647, %v631, 0
        %651 = vmatprep.subr.bf16.mxu0 0
        %652 = vmatpush1.bf16.msra.mxu0 %v629
        %653 = vmatprep.subr.bf16.mxu0 0
        %654 = vmatpush1.bf16.msra.mxu0 %v630
        %655 = vmatprep.subr.bf16.mxu0 0
        %656 = vmatpush1.bf16.msra.mxu0 %v649
        %657 = vmatprep.subr.bf16.mxu0 0
        %658 = vmatpush1.bf16.msra.mxu0 0
        %659 = vmatprep.subr.bf16.mxu0 0
        %660 = vmatpush1.bf16.msra.mxu0 0
        %661 = vmatprep.subr.bf16.mxu0 0
        %662 = vmatpush1.bf16.msra.mxu0 0
        %663 = vmatprep.subr.bf16.mxu0 0
        %664 = vmatpush1.bf16.msra.mxu0 0
        %665 = vmatprep.subr.bf16.mxu0 0
        %666 = vmatpush1.bf16.msra.mxu0 0
        %667 = vmatprep.subr.bf16.mxu0 0
        %668 = vmatpush1.bf16.msra.mxu0 0
        %669 = vmatprep.subr.bf16.mxu0 0
        %670 = vmatpush1.bf16.msra.mxu0 0
        %671 = vmatprep.subr.bf16.mxu0 0
        %672 = vmatpush1.bf16.msra.mxu0 0
        %673 = vmatprep.subr.bf16.mxu0 0
        %674 = vmatpush1.bf16.msra.mxu0 0
        %675 = vmatprep.subr.bf16.mxu0 0
        %676 = vmatpush1.bf16.msra.mxu0 0
        %677 = vmatprep.subr.bf16.mxu0 0
        %678 = vmatpush1.bf16.msra.mxu0 0
        %679 = vmatprep.subr.bf16.mxu0 0
        %680 = vmatpush1.bf16.msra.mxu0 0
        %681 = vmatprep.subr.bf16.mxu0 0
        %682 = vmatpush1.bf16.msra.mxu0 0
        %683 = vmatprep.mubr.bf16.mxu0 0
        %684 = vmatmul.mubr.bf16.gmra.mrb[0].mxu0 %v636
        %v685 = vpop.f32.mrb[0].mxu0
        %v686 = vadd.f32 %v617, %v685
        %v687 = vpop.f32.mrb[0].mxu0
        %v688 = vpop.f32.mrb[0].mxu0
        %v689 = vadd.f32 %v617, %v688
        %v690 = vpop.f32.mrb[0].mxu0
        %691 = vmatprep.mubr.bf16.mxu0 0
        %692 = vmatmul.mubr.bf16.gmra.mrb[0].mxu0 %v639
        %v693 = vpop.f32.mrb[0].mxu0
        %v694 = vadd.f32 %v617, %v693
        %v695 = vpop.f32.mrb[0].mxu0
        %v696 = vpop.f32.mrb[0].mxu0
        %v697 = vadd.f32 %v617, %v696
        %v698 = vpop.f32.mrb[0].mxu0
        %699 = vmatprep.mubr.bf16.mxu0 0
        %700 = vmatmul.mubr.bf16.gmra.mrb[0].mxu0 %v642
        %v701 = vpop.f32.mrb[0].mxu0
        %v702 = vadd.f32 %v617, %v701
        %v703 = vpop.f32.mrb[0].mxu0
        %v704 = vpop.f32.mrb[0].mxu0
        %v705 = vadd.f32 %v617, %v704
        %v706 = vpop.f32.mrb[0].mxu0
        %707 = vmatprep.mubr.bf16.mxu0 0
        %708 = vmatmul.mubr.bf16.gmra.mrb[0].mxu0 %v645
        %v709 = vpop.f32.mrb[0].mxu0
        %v710 = vadd.f32 %v617, %v709
        %v711 = vpop.f32.mrb[0].mxu0
        %v712 = vpop.f32.mrb[0].mxu0
        %v713 = vadd.f32 %v617, %v712
        %v714 = vpop.f32.mrb[0].mxu0
        %715 = vdwg.mxu0
        %v716 = vmax.f32 %v686, 0.0
        %v717 = vmax.f32 %v689, 0.0
        %v718 = vmax.f32 %v694, 0.0
        %v719 = vmax.f32 %v697, 0.0
        %v720 = vmax.f32 %v702, 0.0
        %v721 = vmax.f32 %v705, 0.0
        %v722 = vmax.f32 %v710, 0.0
        %v723 = vmax.f32 %v713, 0.0
        %vm724 = vcmask 64512
        %725 = vst.msk [vmem:[#allocation3] sm:$0xff] %vm724, 0.0
        %vm726 = vcmask 58368
        %727 = vst.msk [vmem:[#allocation3 + $0x8] sm:$0x3] %vm726, 0.0
        %728 = vst.msk [vmem:[#allocation3 + $0x10] sm:$0xff] %vm724, 0.0
        %729 = vst.msk [vmem:[#allocation3 + $0x18] sm:$0x3] %vm726, 0.0
        %730 = vst.msk [vmem:[#allocation3 + $0x20] sm:$0xff] %vm724, 0.0
        %731 = vst.msk [vmem:[#allocation3 + $0x28] sm:$0x3] %vm726, 0.0
        %732 = vst.msk [vmem:[#allocation3 + $0x30] sm:$0xff] %vm724, 0.0
        %733 = vst.msk [vmem:[#allocation3 + $0x38] sm:$0x3] %vm726, 0.0
        %734 = vst.msk [vmem:[#allocation3 + $0x40] sm:$0xff] %vm724, 0.0
        %735 = vst.msk [vmem:[#allocation3 + $0x48] sm:$0x3] %vm726, 0.0
        %736 = vst.msk [vmem:[#allocation3 + $0x50] sm:$0xff] %vm724, 0.0
        %737 = vst.msk [vmem:[#allocation3 + $0x58] sm:$0x3] %vm726, 0.0
        %738 = vst.msk [vmem:[#allocation3 + $0x60] sm:$0xff] %vm724, 0.0
        %739 = vst.msk [vmem:[#allocation3 + $0x68] sm:$0x3] %vm726, 0.0
        %740 = vst.msk [vmem:[#allocation3 + $0x70] sm:$0xff] %vm724, 0.0
        %741 = vst.msk [vmem:[#allocation3 + $0x78] sm:$0x3] %vm726, 0.0
        %742 = vst.msk [vmem:[#allocation3 + $0x80] sm:$0xff] %vm724, 0.0
        %743 = vst.msk [vmem:[#allocation3 + $0x88] sm:$0x3] %vm726, 0.0
        %744 = vst.msk [vmem:[#allocation3 + $0x90] sm:$0xff] %vm724, 0.0
        %745 = vst.msk [vmem:[#allocation3 + $0x98] sm:$0x3] %vm726, 0.0
        %s746 = scalar_lea.vmem [#allocation3], 16
        %747 = vst.msk [vmem:[%s746 + $0x1] sm:$0xff] %vm724, %v716
        %748 = vst.msk [vmem:[%s746 + $0x11] sm:$0xff] %vm724, %v717
        %749 = vst.msk [vmem:[%s746 + $0x21] sm:$0xff] %vm724, %v718
        %750 = vst.msk [vmem:[%s746 + $0x31] sm:$0xff] %vm724, %v719
        %751 = vst.msk [vmem:[%s746 + $0x41] sm:$0xff] %vm724, %v720
        %752 = vst.msk [vmem:[%s746 + $0x51] sm:$0xff] %vm724, %v721
        %753 = vst.msk [vmem:[%s746 + $0x61] sm:$0xff] %vm724, %v722
        %754 = vst.msk [vmem:[%s746 + $0x71] sm:$0xff] %vm724, %v723
        %v755 = vld [vmem:[#allocation3] sm:$0xff]
        %v756 = vld [vmem:[#allocation3 + $0x10] sm:$0xff]
        %v757 = vld [vmem:[#allocation3 + $0x20] sm:$0xff]
        %v758 = vld [vmem:[#allocation3 + $0x30] sm:$0xff]
        %v759 = vld [vmem:[#allocation3 + $0x40] sm:$0xff]
        %v760 = vld [vmem:[#allocation3 + $0x50] sm:$0xff]
        %v761 = vld [vmem:[#allocation3 + $0x60] sm:$0xff]
        %v762 = vld [vmem:[#allocation3 + $0x70] sm:$0xff]
        %v763 = vpack.c.bf16 %v756, %v755
        %v764 = vpack.c.bf16 %v758, %v757
        %v765 = vpack.c.bf16 %v760, %v759
        %v766 = vpack.c.bf16 %v762, %v761
        %767 = vst.msk [vmem:[#allocation5] sm:$0xff] %vm724, %v763
        %768 = vst.msk [vmem:[#allocation5 + $0x8] sm:$0xff] %vm724, %v764
        %769 = vst.msk [vmem:[#allocation5 + $0x10] sm:$0xff] %vm724, %v765
        %770 = vst.msk [vmem:[#allocation5 + $0x18] sm:$0xff] %vm724, %v766
        %v771 = vld [vmem:[#allocation3 + $0x1] sm:$0xff]
        %v772 = vld [vmem:[#allocation3 + $0x11] sm:$0xff]
        %v773 = vld [vmem:[#allocation3 + $0x21] sm:$0xff]
        %v774 = vld [vmem:[#allocation3 + $0x31] sm:$0xff]
        %v775 = vld [vmem:[#allocation3 + $0x41] sm:$0xff]
        %v776 = vld [vmem:[#allocation3 + $0x51] sm:$0xff]
        %v777 = vld [vmem:[#allocation3 + $0x61] sm:$0xff]
        %v778 = vld [vmem:[#allocation3 + $0x71] sm:$0xff]
        %v779 = vpack.c.bf16 %v772, %v771
        %v780 = vpack.c.bf16 %v774, %v773
        %v781 = vpack.c.bf16 %v776, %v775
        %v782 = vpack.c.bf16 %v778, %v777
        %787 = vrot.lane.b32.xlu0 %v779, 8
        %v788 = vpop.permute.xlu0 %787
        %789 = vrot.lane.b32.xlu0 %v780, 8
        %v790 = vpop.permute.xlu0 %789
        %791 = vrot.lane.b32.xlu0 %v781, 8
        %v792 = vpop.permute.xlu0 %791
        %793 = vrot.lane.b32.xlu0 %v782, 8
        %v794 = vpop.permute.xlu0 %793
        %vm799 = vcmask 130112
        %800 = vst.msk [vmem:[#allocation5] sm:$0xff] %vm799, %v788
        %801 = vst.msk [vmem:[#allocation5 + $0x8] sm:$0xff] %vm799, %v790
        %802 = vst.msk [vmem:[#allocation5 + $0x10] sm:$0xff] %vm799, %v792
        %803 = vst.msk [vmem:[#allocation5 + $0x18] sm:$0xff] %vm799, %v794
        %v804 = vld [vmem:[#allocation3 + $0x2] sm:$0xff]
        %v805 = vld [vmem:[#allocation3 + $0x12] sm:$0xff]
        %v806 = vld [vmem:[#allocation3 + $0x22] sm:$0xff]
        %v807 = vld [vmem:[#allocation3 + $0x32] sm:$0xff]
        %v808 = vld [vmem:[#allocation3 + $0x42] sm:$0xff]
        %v809 = vld [vmem:[#allocation3 + $0x52] sm:$0xff]
        %v810 = vld [vmem:[#allocation3 + $0x62] sm:$0xff]
        %v811 = vld [vmem:[#allocation3 + $0x72] sm:$0xff]
        %v812 = vpack.c.bf16 %v805, %v804
        %v813 = vpack.c.bf16 %v807, %v806
        %v814 = vpack.c.bf16 %v809, %v808
        %v815 = vpack.c.bf16 %v811, %v810
        %820 = vrot.lane.b32.xlu0 %v812, 16
        %v821 = vpop.permute.xlu0 %820
        %822 = vrot.lane.b32.xlu0 %v813, 16
        %v823 = vpop.permute.xlu0 %822
        %824 = vrot.lane.b32.xlu0 %v814, 16
        %v825 = vpop.permute.xlu0 %824
        %826 = vrot.lane.b32.xlu0 %v815, 16
        %v827 = vpop.permute.xlu0 %826
        %vm832 = vcmask 195712
        %833 = vst.msk [vmem:[#allocation5] sm:$0xff] %vm832, %v821
        %834 = vst.msk [vmem:[#allocation5 + $0x8] sm:$0xff] %vm832, %v823
        %835 = vst.msk [vmem:[#allocation5 + $0x10] sm:$0xff] %vm832, %v825
        %836 = vst.msk [vmem:[#allocation5 + $0x18] sm:$0xff] %vm832, %v827
        %v837 = vld [vmem:[%s746] sm:$0xff]
        %v838 = vld [vmem:[%s746 + $0x10] sm:$0xff]
        %v839 = vld [vmem:[%s746 + $0x20] sm:$0xff]
        %v840 = vld [vmem:[%s746 + $0x30] sm:$0xff]
        %v841 = vld [vmem:[%s746 + $0x40] sm:$0xff]
        %v842 = vld [vmem:[%s746 + $0x50] sm:$0xff]
        %v843 = vld [vmem:[%s746 + $0x60] sm:$0xff]
        %v844 = vld [vmem:[%s746 + $0x70] sm:$0xff]
        %v845 = vpack.c.bf16 %v838, %v837
        %v846 = vpack.c.bf16 %v840, %v839
        %v847 = vpack.c.bf16 %v842, %v841
        %v848 = vpack.c.bf16 %v844, %v843
        %853 = vrot.lane.b32.xlu0 %v845, 24
        %v854 = vpop.permute.xlu0 %853
        %855 = vrot.lane.b32.xlu0 %v846, 24
        %v856 = vpop.permute.xlu0 %855
        %857 = vrot.lane.b32.xlu0 %v847, 24
        %v858 = vpop.permute.xlu0 %857
        %859 = vrot.lane.b32.xlu0 %v848, 24
        %v860 = vpop.permute.xlu0 %859
        %vm865 = vcmask 261312
        %866 = vst.msk [vmem:[#allocation5] sm:$0xff] %vm865, %v854
        %867 = vst.msk [vmem:[#allocation5 + $0x8] sm:$0xff] %vm865, %v856
        %868 = vst.msk [vmem:[#allocation5 + $0x10] sm:$0xff] %vm865, %v858
        %869 = vst.msk [vmem:[#allocation5 + $0x18] sm:$0xff] %vm865, %v860
        %v870 = vld [vmem:[%s746 + $0x1] sm:$0xff]
        %v871 = vld [vmem:[%s746 + $0x11] sm:$0xff]
        %v872 = vld [vmem:[%s746 + $0x21] sm:$0xff]
        %v873 = vld [vmem:[%s746 + $0x31] sm:$0xff]
        %v874 = vld [vmem:[%s746 + $0x41] sm:$0xff]
        %v875 = vld [vmem:[%s746 + $0x51] sm:$0xff]
        %v876 = vld [vmem:[%s746 + $0x61] sm:$0xff]
        %v877 = vld [vmem:[%s746 + $0x71] sm:$0xff]
        %v878 = vpack.c.bf16 %v871, %v870
        %v879 = vpack.c.bf16 %v873, %v872
        %v880 = vpack.c.bf16 %v875, %v874
        %v881 = vpack.c.bf16 %v877, %v876
        %886 = vrot.lane.b32.xlu0 %v878, 32
        %v887 = vpop.permute.xlu0 %886
        %888 = vrot.lane.b32.xlu0 %v879, 32
        %v889 = vpop.permute.xlu0 %888
        %890 = vrot.lane.b32.xlu0 %v880, 32
        %v891 = vpop.permute.xlu0 %890
        %892 = vrot.lane.b32.xlu0 %v881, 32
        %v893 = vpop.permute.xlu0 %892
        %vm898 = vcmask 326912
        %899 = vst.msk [vmem:[#allocation5] sm:$0xff] %vm898, %v887
        %900 = vst.msk [vmem:[#allocation5 + $0x8] sm:$0xff] %vm898, %v889
        %901 = vst.msk [vmem:[#allocation5 + $0x10] sm:$0xff] %vm898, %v891
        %902 = vst.msk [vmem:[#allocation5 + $0x18] sm:$0xff] %vm898, %v893
        %v903 = vld [vmem:[%s746 + $0x2] sm:$0xff]
        %v904 = vld [vmem:[%s746 + $0x12] sm:$0xff]
        %v905 = vld [vmem:[%s746 + $0x22] sm:$0xff]
        %v906 = vld [vmem:[%s746 + $0x32] sm:$0xff]
        %v907 = vld [vmem:[%s746 + $0x42] sm:$0xff]
        %v908 = vld [vmem:[%s746 + $0x52] sm:$0xff]
        %v909 = vld [vmem:[%s746 + $0x62] sm:$0xff]
        %v910 = vld [vmem:[%s746 + $0x72] sm:$0xff]
        %v911 = vpack.c.bf16 %v904, %v903
        %v912 = vpack.c.bf16 %v906, %v905
        %v913 = vpack.c.bf16 %v908, %v907
        %v914 = vpack.c.bf16 %v910, %v909
        %919 = vrot.lane.b32.xlu0 %v911, 40
        %v920 = vpop.permute.xlu0 %919
        %921 = vrot.lane.b32.xlu0 %v912, 40
        %v922 = vpop.permute.xlu0 %921
        %923 = vrot.lane.b32.xlu0 %v913, 40
        %v924 = vpop.permute.xlu0 %923
        %925 = vrot.lane.b32.xlu0 %v914, 40
        %v926 = vpop.permute.xlu0 %925
        %vm931 = vcmask 392512
        %932 = vst.msk [vmem:[#allocation5] sm:$0xff] %vm931, %v920
        %933 = vst.msk [vmem:[#allocation5 + $0x8] sm:$0xff] %vm931, %v922
        %934 = vst.msk [vmem:[#allocation5 + $0x10] sm:$0xff] %vm931, %v924
        %935 = vst.msk [vmem:[#allocation5 + $0x18] sm:$0xff] %vm931, %v926
        %s936 = scalar_lea.vmem [#allocation3], 32
        %v937 = vld [vmem:[%s936] sm:$0xff]
        %v938 = vld [vmem:[%s936 + $0x10] sm:$0xff]
        %v939 = vld [vmem:[%s936 + $0x20] sm:$0xff]
        %v940 = vld [vmem:[%s936 + $0x30] sm:$0xff]
        %v941 = vld [vmem:[%s936 + $0x40] sm:$0xff]
        %v942 = vld [vmem:[%s936 + $0x50] sm:$0xff]
        %v943 = vld [vmem:[%s936 + $0x60] sm:$0xff]
        %v944 = vld [vmem:[%s936 + $0x70] sm:$0xff]
        %v945 = vpack.c.bf16 %v938, %v937
        %v946 = vpack.c.bf16 %v940, %v939
        %v947 = vpack.c.bf16 %v942, %v941
        %v948 = vpack.c.bf16 %v944, %v943
        %953 = vrot.lane.b32.xlu0 %v945, 48
        %v954 = vpop.permute.xlu0 %953
        %955 = vrot.lane.b32.xlu0 %v946, 48
        %v956 = vpop.permute.xlu0 %955
        %957 = vrot.lane.b32.xlu0 %v947, 48
        %v958 = vpop.permute.xlu0 %957
        %959 = vrot.lane.b32.xlu0 %v948, 48
        %v960 = vpop.permute.xlu0 %959
        %vm965 = vcmask 458112
        %966 = vst.msk [vmem:[#allocation5] sm:$0xff] %vm965, %v954
        %967 = vst.msk [vmem:[#allocation5 + $0x8] sm:$0xff] %vm965, %v956
        %968 = vst.msk [vmem:[#allocation5 + $0x10] sm:$0xff] %vm965, %v958
        %969 = vst.msk [vmem:[#allocation5 + $0x18] sm:$0xff] %vm965, %v960
        %v970 = vld [vmem:[%s936 + $0x1] sm:$0xff]
        %v971 = vld [vmem:[%s936 + $0x11] sm:$0xff]
        %v972 = vld [vmem:[%s936 + $0x21] sm:$0xff]
        %v973 = vld [vmem:[%s936 + $0x31] sm:$0xff]
        %v974 = vld [vmem:[%s936 + $0x41] sm:$0xff]
        %v975 = vld [vmem:[%s936 + $0x51] sm:$0xff]
        %v976 = vld [vmem:[%s936 + $0x61] sm:$0xff]
        %v977 = vld [vmem:[%s936 + $0x71] sm:$0xff]
        %v978 = vpack.c.bf16 %v971, %v970
        %v979 = vpack.c.bf16 %v973, %v972
        %v980 = vpack.c.bf16 %v975, %v974
        %v981 = vpack.c.bf16 %v977, %v976
        %986 = vrot.lane.b32.xlu0 %v978, 56
        %v987 = vpop.permute.xlu0 %986
        %988 = vrot.lane.b32.xlu0 %v979, 56
        %v989 = vpop.permute.xlu0 %988
        %990 = vrot.lane.b32.xlu0 %v980, 56
        %v991 = vpop.permute.xlu0 %990
        %992 = vrot.lane.b32.xlu0 %v981, 56
        %v993 = vpop.permute.xlu0 %992
        %vm998 = vcmask 523712
        %999 = vst.msk [vmem:[#allocation5] sm:$0xff] %vm998, %v987
        %1000 = vst.msk [vmem:[#allocation5 + $0x8] sm:$0xff] %vm998, %v989
        %1001 = vst.msk [vmem:[#allocation5 + $0x10] sm:$0xff] %vm998, %v991
        %1002 = vst.msk [vmem:[#allocation5 + $0x18] sm:$0xff] %vm998, %v993
        %v1003 = vld [vmem:[%s936 + $0x2] sm:$0xff]
        %v1004 = vld [vmem:[%s936 + $0x12] sm:$0xff]
        %v1005 = vld [vmem:[%s936 + $0x22] sm:$0xff]
        %v1006 = vld [vmem:[%s936 + $0x32] sm:$0xff]
        %v1007 = vld [vmem:[%s936 + $0x42] sm:$0xff]
        %v1008 = vld [vmem:[%s936 + $0x52] sm:$0xff]
        %v1009 = vld [vmem:[%s936 + $0x62] sm:$0xff]
        %v1010 = vld [vmem:[%s936 + $0x72] sm:$0xff]
        %v1011 = vpack.c.bf16 %v1004, %v1003
        %v1012 = vpack.c.bf16 %v1006, %v1005
        %v1013 = vpack.c.bf16 %v1008, %v1007
        %v1014 = vpack.c.bf16 %v1010, %v1009
        %1019 = vrot.lane.b32.xlu0 %v1011, 64
        %v1020 = vpop.permute.xlu0 %1019
        %1021 = vrot.lane.b32.xlu0 %v1012, 64
        %v1022 = vpop.permute.xlu0 %1021
        %1023 = vrot.lane.b32.xlu0 %v1013, 64
        %v1024 = vpop.permute.xlu0 %1023
        %1025 = vrot.lane.b32.xlu0 %v1014, 64
        %v1026 = vpop.permute.xlu0 %1025
        %vm1031 = vcmask 589312
        %1032 = vst.msk [vmem:[#allocation5] sm:$0xff] %vm1031, %v1020
        %1033 = vst.msk [vmem:[#allocation5 + $0x8] sm:$0xff] %vm1031, %v1022
        %1034 = vst.msk [vmem:[#allocation5 + $0x10] sm:$0xff] %vm1031, %v1024
        %1035 = vst.msk [vmem:[#allocation5 + $0x18] sm:$0xff] %vm1031, %v1026
        %v1036 = vld [vmem:[#allocation5] sm:$0xff]
        %v1037 = vld [vmem:[#allocation5 + $0x8] sm:$0xff]
        %v1038 = vld [vmem:[#allocation5 + $0x10] sm:$0xff]
        %v1039 = vld [vmem:[#allocation5 + $0x18] sm:$0xff]
        %v1040 = vld [vmem:[%s3] sm:$0xf]
        %v1041 = vld [vmem:[%s3 + $0x4] sm:$0xf]
        %v1042 = vld [vmem:[%s3 + $0x8] sm:$0xf]
        %v1043 = vld [vmem:[%s3 + $0xc] sm:$0xf]
        %v1044 = vld [vmem:[%s3 + $0x10] sm:$0xf]
        %v1045 = vld [vmem:[%s3 + $0x14] sm:$0xf]
        %v1046 = vld [vmem:[%s3 + $0x18] sm:$0xf]
        %v1047 = vld [vmem:[%s3 + $0x1c] sm:$0xf]
        %v1048 = vld [vmem:[%s3 + $0x20] sm:$0xf]
        %v1049 = vld [vmem:[%s4] sm:$0x1]
        %v1051 = vlaneseq
        %v1052 = vshrl.u32 %v1051, 7
        %v1053 = vsub.s32 0, %v1052
        %v1054 = vrot.slane %v1049, %v1053
        %v1065 = vunpack.c.l.b16 %v1040
        %v1066 = vunpack.c.l.b16 %v1041
        %v1067 = vunpack.c.l.b16 %v1042
        %v1068 = vunpack.c.l.b16 %v1043
        %v1069 = vunpack.c.l.b16 %v1044
        %v1070 = vunpack.c.l.b16 %v1045
        %v1071 = vunpack.c.l.b16 %v1046
        %v1072 = vunpack.c.l.b16 %v1047
        %v1073 = vunpack.c.l.b16 %v1048
        %v1074 = vpack.c.b16 %v1066, %v1065
        %v1075 = vpack.c.b16 %v1068, %v1067
        %v1076 = vpack.c.b16 %v1070, %v1069
        %v1077 = vpack.c.b16 %v1072, %v1071
        %v1078 = vpack.c.b16 %v1073, %v1073
        %vm1083 = vcmask 588800
        %v1085 = vsel %vm1083, %v1036, 0
        %v1088 = vsel %vm1083, %v1037, 0
        %v1091 = vsel %vm1083, %v1038, 0
        %v1094 = vsel %vm1083, %v1039, 0
        %vm1096 = vcmask 1043456
        %v1098 = vsel %vm1096, %v1078, 0
        %1100 = vmatprep.subr.bf16.mxu0 0
        %1101 = vmatpush1.bf16.msra.mxu0 %v1074
        %1102 = vmatprep.subr.bf16.mxu0 0
        %1103 = vmatpush1.bf16.msra.mxu0 %v1075
        %1104 = vmatprep.subr.bf16.mxu0 0
        %1105 = vmatpush1.bf16.msra.mxu0 %v1076
        %1106 = vmatprep.subr.bf16.mxu0 0
        %1107 = vmatpush1.bf16.msra.mxu0 %v1077
        %1108 = vmatprep.subr.bf16.mxu0 0
        %1109 = vmatpush1.bf16.msra.mxu0 %v1098
        %1110 = vmatprep.subr.bf16.mxu0 0
        %1111 = vmatpush1.bf16.msra.mxu0 0
        %1112 = vmatprep.subr.bf16.mxu0 0
        %1113 = vmatpush1.bf16.msra.mxu0 0
        %1114 = vmatprep.subr.bf16.mxu0 0
        %1115 = vmatpush1.bf16.msra.mxu0 0
        %1116 = vmatprep.subr.bf16.mxu0 0
        %1117 = vmatpush1.bf16.msra.mxu0 0
        %1118 = vmatprep.subr.bf16.mxu0 0
        %1119 = vmatpush1.bf16.msra.mxu0 0
        %1120 = vmatprep.subr.bf16.mxu0 0
        %1121 = vmatpush1.bf16.msra.mxu0 0
        %1122 = vmatprep.subr.bf16.mxu0 0
        %1123 = vmatpush1.bf16.msra.mxu0 0
        %1124 = vmatprep.subr.bf16.mxu0 0
        %1125 = vmatpush1.bf16.msra.mxu0 0
        %1126 = vmatprep.subr.bf16.mxu0 0
        %1127 = vmatpush1.bf16.msra.mxu0 0
        %1128 = vmatprep.subr.bf16.mxu0 0
        %1129 = vmatpush1.bf16.msra.mxu0 0
        %1130 = vmatprep.subr.bf16.mxu0 0
        %1131 = vmatpush1.bf16.msra.mxu0 0
        %1132 = vmatprep.mubr.bf16.mxu0 0
        %1133 = vmatmul.mubr.bf16.gmra.mrb[0].mxu0 %v1085
        %v1134 = vpop.f32.mrb[0].mxu0
        %v1135 = vadd.f32 %v1054, %v1134
        %v1136 = vpop.f32.mrb[0].mxu0
        %v1137 = vpop.f32.mrb[0].mxu0
        %v1138 = vadd.f32 %v1054, %v1137
        %v1139 = vpop.f32.mrb[0].mxu0
        %1140 = vmatprep.mubr.bf16.mxu0 0
        %1141 = vmatmul.mubr.bf16.gmra.mrb[0].mxu0 %v1088
        %v1142 = vpop.f32.mrb[0].mxu0
        %v1143 = vadd.f32 %v1054, %v1142
        %v1144 = vpop.f32.mrb[0].mxu0
        %v1145 = vpop.f32.mrb[0].mxu0
        %v1146 = vadd.f32 %v1054, %v1145
        %v1147 = vpop.f32.mrb[0].mxu0
        %1148 = vmatprep.mubr.bf16.mxu0 0
        %1149 = vmatmul.mubr.bf16.gmra.mrb[0].mxu0 %v1091
        %v1150 = vpop.f32.mrb[0].mxu0
        %v1151 = vadd.f32 %v1054, %v1150
        %v1152 = vpop.f32.mrb[0].mxu0
        %v1153 = vpop.f32.mrb[0].mxu0
        %v1154 = vadd.f32 %v1054, %v1153
        %v1155 = vpop.f32.mrb[0].mxu0
        %1156 = vmatprep.mubr.bf16.mxu0 0
        %1157 = vmatmul.mubr.bf16.gmra.mrb[0].mxu0 %v1094
        %v1158 = vpop.f32.mrb[0].mxu0
        %v1159 = vadd.f32 %v1054, %v1158
        %v1160 = vpop.f32.mrb[0].mxu0
        %v1161 = vpop.f32.mrb[0].mxu0
        %v1162 = vadd.f32 %v1054, %v1161
        %v1163 = vpop.f32.mrb[0].mxu0
        %1164 = vdwg.mxu0
        %v1165 = vmax.f32 %v1135, 0.0
        %v1166 = vmax.f32 %v1138, 0.0
        %v1167 = vmax.f32 %v1143, 0.0
        %v1168 = vmax.f32 %v1146, 0.0
        %v1169 = vmax.f32 %v1151, 0.0
        %v1170 = vmax.f32 %v1154, 0.0
        %v1171 = vmax.f32 %v1159, 0.0
        %v1172 = vmax.f32 %v1162, 0.0
        %1173 = vst [vmem:[%s217] sm:$0xff] %v1165
        %1174 = vst [vmem:[%s217 + $0x8] sm:$0xff] %v1166
        %1175 = vst [vmem:[%s217 + $0x10] sm:$0xff] %v1167
        %1176 = vst [vmem:[%s217 + $0x18] sm:$0xff] %v1168
        %1177 = vst [vmem:[%s217 + $0x20] sm:$0xff] %v1169
        %1178 = vst [vmem:[%s217 + $0x28] sm:$0xff] %v1170
        %1179 = vst [vmem:[%s217 + $0x30] sm:$0xff] %v1171
        %1180 = vst [vmem:[%s217 + $0x38] sm:$0xff] %v1172
        %s1181 = sand.u32 %s137, 1
        %s1182 = scalar_lea.sflag [#allocation7], %s1181
        %s1183 = sand.u32 %s137, 1
        %s1184 = smul.addr %s1183, 64
        %s1185 = scalar_lea.vmem [#allocation6], %s1184
        // Predicated region
        $region41: #{tpu_custom_call.1} parent=39 // pred_check
          %p1186 = pneg %p147
        $region42: #{tpu_custom_call.1} parent=39 // pred_check_branch
          %1188 = sbr.rel (%p1186) target = $region44
        $region43: #{tpu_custom_call.1} parent=39 // pred_region
          %s1190 = ssub.s32 1024, 1024
          %1191 = vsyncadd %s1182, %s1190
          %s1192 = smul.addr %s19, 8
          %s1193 = smul.addr %s1192, 128
          %s1194 = scalar_lea.hbm %s5, %s1193
          %s1195 = sshll.u32 %s1185, 4
          %s1196 = int_to_ptr.vmem [resolvable:$true] %s1195
          %1201 = dma.vmem_to_hbm [thread:$0]  %s1196, 1024, %s1194, %s1182, 128, 128, 8
        $region44: #{tpu_custom_call.1} parent=39 // pred_fallthru
          _
      $region40: #{tpu_custom_call.1} parent=5 // pred_fallthru
        _
      %p1202 = scmp.le.s32.totalorder 2, %s14
      // Predicated region
      $region45: #{tpu_custom_call.1} parent=5 // pred_check
        %p1203 = pneg %p1202
      $region46: #{tpu_custom_call.1} parent=5 // pred_check_branch
        %1205 = sbr.rel (%p1203) target = $region48
      $region47: #{tpu_custom_call.1} parent=5 // pred_region
        %s1206 = ssub.s32 %s14, 2
        // Predicated region
        $region49: #{tpu_custom_call.1} parent=47 // pred_check
          %p1207 = pneg %p153
        $region50: #{tpu_custom_call.1} parent=47 // pred_check_branch
          %1209 = sbr.rel (%p1207) target = $region52
        $region51: #{tpu_custom_call.1} parent=47 // pred_region
          %s1210 = sand.u32 %s138, 1
          %s1211 = scalar_lea.sflag [#allocation7], %s1210
          %s1212 = sand.u32 %s138, 1
          %s1213 = smul.addr %s1212, 64
          %s1214 = scalar_lea.vmem [#allocation6], %s1213
          %1215 = dma.done %s1211, 1024
        $region52: #{tpu_custom_call.1} parent=47 // pred_fallthru
          _
      $region48: #{tpu_custom_call.1} parent=5 // pred_fallthru
        _
    $region6: #{tpu_custom_call.1} parent=1 // loop_footer
      %s18 = sadd.s32 1, %s14
    $region7: #{tpu_custom_call.1} parent=1 // loop_footer_branch
      %13 = sbr.rel target = $region3
    $region8: #{tpu_custom_call.1} parent=1 // loop_exit
      _
    %1216 = vsyncpa [#allocation7], 1
    %s1217 = scalar_lea.sflag [#allocation7], 1
    %1218 = vsyncpa %s1217, 1

</llo_original>
